<compile_context>
chip_gen: v5e
topology: v5e:2x2
jax: 0.10.0
libtpu: 0.0.40
codegen_flags: <defaults>
</compile_context>

<pallas_src>
import functools
import math

import jax
import jax.numpy as jnp
from jax import lax
from jax.experimental import pallas as pl
from jax.experimental.pallas import tpu as pltpu


def _round_up(a, b):
    return (a + b - 1) // b * b


def make_cevae_kernel(n_rows, n_rows_padded, tile_rows, input_dim, outcome_dim,
                      hidden_dim):
    Din, Dy, H = input_dim, outcome_dim, hidden_dim
    L = H
    need_mask = (n_rows_padded != n_rows)

    def kernel(xty_ref, eps_ref,
               w1_ref, b1_ref, w2_ref, b2_ref, zw_ref, zb_ref,
               dw1_ref, db1_ref, dw2_ref, db2_ref, dw3_ref, db3_ref,
               ow1_ref, ob1_ref, o0w2_ref, o0b2_ref, o1w2_ref, o1b2_ref,
               scales_ref,
               xr_ref, yp_ref, part_ref):
        dot = functools.partial(jnp.dot, preferred_element_type=jnp.float32)

        xty = xty_ref[...]                 # (T, Din+1+Dy) pre-concat [x, t, y]
        x = xty[:, :Din]
        t = xty[:, Din:Din + 1]
        y = xty[:, Din + 1:]
        eps = eps_ref[...]

        # ScaledTanh scales; hoist reciprocals once per tile (EUP relief).
        s_enc1 = scales_ref[0]
        s_enc2 = scales_ref[1]
        s_dec1 = scales_ref[2]
        s_dec2 = scales_ref[3]
        s_o0 = scales_ref[4]
        s_o1 = scales_ref[5]
        inv_enc1 = 1.0 / s_enc1
        inv_enc2 = 1.0 / s_enc2
        inv_dec1 = 1.0 / s_dec1
        inv_dec2 = 1.0 / s_dec2

        def st(v, s, inv_s):
            # ScaledTanh: tanh(v / s) * s, with the divide turned into a mul.
            return jnp.tanh(v * inv_s) * s

        # --- encoder: fused Linear over concat([x, t, y]) ---
        h1 = st(dot(xty, w1_ref[...]) + b1_ref[...], s_enc1, inv_enc1)
        h2 = st(dot(h1, w2_ref[...]) + b2_ref[...], s_enc2, inv_enc2)

        # fused mu/logvar heads: one (H, 2L) matmul, then split
        zml = dot(h2, zw_ref[...]) + zb_ref[...]
        mu = zml[:, :L]
        logvar = zml[:, L:]

        # --- reparameterize: z = mu + eps * exp(0.5 * logvar) ---
        e = jnp.exp(0.5 * logvar)
        z = mu + eps * e

        # --- decoder ---
        d1 = st(dot(z, dw1_ref[...]) + db1_ref[...], s_dec1, inv_dec1)
        d2 = st(dot(d1, dw2_ref[...]) + db2_ref[...], s_dec2, inv_dec2)
        x_recon = dot(d2, dw3_ref[...]) + db3_ref[...]

        # --- fused outcome heads (layer 1 fused into (L, 2H)) ---
        col = lax.broadcasted_iota(jnp.int32, (1, 2 * H), 1)
        s_vec = jnp.where(col < H, s_o0, s_o1)
        inv_vec = jnp.where(col < H, 1.0 / s_o0, 1.0 / s_o1)
        g = st(dot(z, ow1_ref[...]) + ob1_ref[...], s_vec, inv_vec)
        y0 = dot(g[:, :H], o0w2_ref[...]) + o0b2_ref[...]
        y1 = dot(g[:, H:], o1w2_ref[...]) + o1b2_ref[...]

        t_pred = t                        # forward() always supplies t
        y_pred = t_pred * y1 + (1.0 - t_pred) * y0

        xr_ref[...] = x_recon
        yp_ref[...] = y_pred

        # --- per-tile loss partials (one cross-lane reduce per term per tile) ---
        if need_mask:
            row = (pl.program_id(0) * tile_rows
                   + lax.broadcasted_iota(jnp.int32, (tile_rows, 1), 0))
            mask = (row < n_rows).astype(jnp.float32)
        else:
            mask = 1.0

        recon_sse = jnp.sum(mask * (x_recon - x) ** 2)
        kl_sum = jnp.sum(mask * (-0.5 * (1.0 + logvar - mu * mu - e * e)))
        log_tp = jnp.maximum(jnp.log(t_pred), -100.0)       # PyTorch BCE clamp
        log_1mtp = jnp.maximum(jnp.log(1.0 - t_pred), -100.0)
        bce_sum = jnp.sum(mask * (-(t * log_tp + (1.0 - t) * log_1mtp)))
        out_sse = jnp.sum(mask * (y_pred - y) ** 2)

        # lane-dense (8, 128) partial block: scalars at row 0, lanes 0..3
        sub = lax.broadcasted_iota(jnp.int32, (8, 128), 0)
        lane = lax.broadcasted_iota(jnp.int32, (8, 128), 1)
        blk = jnp.where((sub == 0) & (lane == 0), recon_sse, 0.0)
        blk = blk + jnp.where((sub == 0) & (lane == 1), kl_sum, 0.0)
        blk = blk + jnp.where((sub == 0) & (lane == 2), bce_sum, 0.0)
        blk = blk + jnp.where((sub == 0) & (lane == 3), out_sse, 0.0)
        part_ref[...] = blk

    return kernel


_WEIGHT_ORDER = [
    "enc_w1", "enc_b1", "enc_w2", "enc_b2", "z_w", "z_b",
    "dec_w1", "dec_b1", "dec_w2", "dec_b2", "dec_w3", "dec_b3",
    "o_w1", "o_b1", "o0_w2", "o0_b2", "o1_w2", "o1_b2",
]


def cevae_forward(params, x, t, y, eps, *, hidden_dim, beta=1.0, tile_rows=512):
    B, S, Din = x.shape
    Dy = y.shape[-1]
    L = hidden_dim
    N = B * S

    # Large row tiles (multiple of 8); clamp for tiny inputs; pad + mask tail.
    tile_rows = max(8, min(_round_up(tile_rows, 8), _round_up(N, 8)))
    n_pad = _round_up(N, tile_rows)
    num_tiles = n_pad // tile_rows

    x2 = x.reshape(N, Din).astype(jnp.float32)
    t2 = t.reshape(N, 1).astype(jnp.float32)
    y2 = y.reshape(N, Dy).astype(jnp.float32)
    e2 = eps.reshape(N, L).astype(jnp.float32)

    xty = jnp.concatenate([x2, t2, y2], axis=1)          # (N, Din+1+Dy)
    if n_pad != N:
        pad = n_pad - N
        xty = jnp.pad(xty, ((0, pad), (0, 0)))
        e2 = jnp.pad(e2, ((0, pad), (0, 0)))
    d_xty = Din + 1 + Dy

    kernel = make_cevae_kernel(N, n_pad, tile_rows, Din, Dy, hidden_dim)

    def row_spec(feat):
        return pl.BlockSpec((tile_rows, feat), lambda i: (i, 0))

    def full_spec(shape):
        return pl.BlockSpec(shape, lambda i: (0, 0))

    inputs = [xty, e2] + [params[k] for k in _WEIGHT_ORDER] + [params["scales"]]
    in_specs = [row_spec(d_xty), row_spec(L)]
    in_specs += [full_spec(params[k].shape) for k in _WEIGHT_ORDER]
    in_specs.append(pl.BlockSpec(memory_space=pltpu.MemorySpace.SMEM))

    out_shape = (
        jax.ShapeDtypeStruct((n_pad, Din), jnp.float32),
        jax.ShapeDtypeStruct((n_pad, Dy), jnp.float32),
        jax.ShapeDtypeStruct((num_tiles * 8, 128), jnp.float32),
    )
    out_specs = (
        row_spec(Din),
        row_spec(Dy),
        pl.BlockSpec((8, 128), lambda i: (i, 0)),
    )

    x_recon, y_pred, partials = pl.pallas_call(
        kernel,
        out_shape=out_shape,
        grid=(num_tiles,),
        in_specs=in_specs,
        out_specs=out_specs,
        compiler_params=pltpu.CompilerParams(
            dimension_semantics=("parallel",),       # shards across TCs on v7x
            vmem_limit_bytes=32 * 1024 * 1024,
        ),
    )(*inputs)

    # Final reductions + beta-weighted sum in plain JAX (keeps the grid parallel).
    totals = jnp.sum(partials, axis=0)                   # (128,)
    recon_loss = totals[0] / (N * Din)
    kl_loss = totals[1] / N
    treat_loss = totals[2] / N
    outcome_loss = totals[3] / (N * Dy)
    total_loss = recon_loss + beta * kl_loss + treat_loss + outcome_loss

    # Match PyTorch forward() return order: (x_recon, y_pred, t_pred, total_loss);
    # t_pred is a pure pass-through of t, returned from the wrapper (no kernel output).
    return (x_recon[:N].reshape(B, S, Din),
            y_pred[:N].reshape(B, S, Dy),
            t2.reshape(B, S, 1),
            total_loss)


def init_params(key, input_dim, outcome_dim, hidden_dim):
    """Deterministic init mirroring nn.Linear defaults, with heads pre-fused."""
    H = hidden_dim
    L = hidden_dim
    keys = iter(jax.random.split(key, 40))

    def linear(fan_in, fan_out):
        k = 1.0 / math.sqrt(fan_in)
        w = jax.random.uniform(next(keys), (fan_in, fan_out), jnp.float32, -k, k)
        b = jax.random.uniform(next(keys), (1, fan_out), jnp.float32, -k, k)
        return w, b

    p = {}
    p["enc_w1"], p["enc_b1"] = linear(input_dim + 1 + outcome_dim, H)
    p["enc_w2"], p["enc_b2"] = linear(H, H)
    zm_w, zm_b = linear(H, L)
    zl_w, zl_b = linear(H, L)
    p["z_w"] = jnp.concatenate([zm_w, zl_w], axis=1)      # fused (H, 2L)
    p["z_b"] = jnp.concatenate([zm_b, zl_b], axis=1)
    p["dec_w1"], p["dec_b1"] = linear(L, H)
    p["dec_w2"], p["dec_b2"] = linear(H, H)
    p["dec_w3"], p["dec_b3"] = linear(H, input_dim)
    o0_w1, o0_b1 = linear(L, H)
    o1_w1, o1_b1 = linear(L, H)
    p["o_w1"] = jnp.concatenate([o0_w1, o1_w1], axis=1)   # fused (L, 2H)
    p["o_b1"] = jnp.concatenate([o0_b1, o1_b1], axis=1)
    p["o0_w2"], p["o0_b2"] = linear(H, outcome_dim)
    p["o1_w2"], p["o1_b2"] = linear(H, outcome_dim)
    # ScaledTanh scales: enc1, enc2, dec1, dec2, outcome_t0, outcome_t1 (init 1.0)
    p["scales"] = jnp.ones((6,), jnp.float32)
    # TODO(synk): treatment_predictor / treatment_inference heads exist in
    # __init__ but are never used by forward() (t is always provided), so they
    # are intentionally not materialized here.
    return p


def cevae_forward_ref(params, x, t, y, eps, hidden_dim, beta=1.0):
    """Plain-JAX reference mirroring the PyTorch forward() (same fused params)."""
    B, S, Din = x.shape
    Dy = y.shape[-1]
    H = L = hidden_dim
    N = B * S
    p = params
    x2 = x.reshape(N, Din)
    t2 = t.reshape(N, 1)
    y2 = y.reshape(N, Dy)
    e2 = eps.reshape(N, L)
    sc = p["scales"]

    st = lambda v, s: jnp.tanh(v / s) * s
    xty = jnp.concatenate([x2, t2, y2], axis=1)
    h1 = st(xty @ p["enc_w1"] + p["enc_b1"], sc[0])
    h2 = st(h1 @ p["enc_w2"] + p["enc_b2"], sc[1])
    zml = h2 @ p["z_w"] + p["z_b"]
    mu, logvar = zml[:, :L], zml[:, L:]
    z = mu + e2 * jnp.exp(0.5 * logvar)
    d1 = st(z @ p["dec_w1"] + p["dec_b1"], sc[2])
    d2 = st(d1 @ p["dec_w2"] + p["dec_b2"], sc[3])
    x_recon = d2 @ p["dec_w3"] + p["dec_b3"]
    pre = z @ p["o_w1"] + p["o_b1"]
    y0 = st(pre[:, :H], sc[4]) @ p["o0_w2"] + p["o0_b2"]
    y1 = st(pre[:, H:], sc[5]) @ p["o1_w2"] + p["o1_b2"]
    t_pred = t2
    y_pred = t_pred * y1 + (1.0 - t_pred) * y0

    recon_loss = jnp.mean((x_recon - x2) ** 2)
    kl_loss = jnp.mean(-0.5 * jnp.sum(1.0 + logvar - mu**2 - jnp.exp(logvar), axis=1))
    log_tp = jnp.maximum(jnp.log(t_pred), -100.0)
    log_1mtp = jnp.maximum(jnp.log(1.0 - t_pred), -100.0)
    treat_loss = jnp.mean(-(t2 * log_tp + (1.0 - t2) * log_1mtp))
    outcome_loss = jnp.mean((y_pred - y2) ** 2)
    total = recon_loss + beta * kl_loss + treat_loss + outcome_loss
    return (x_recon.reshape(B, S, Din), y_pred.reshape(B, S, Dy),
            t_pred.reshape(B, S, 1), total)


if __name__ == "__main__":
    B, S, Din, Dy, H = 2, 8, 16, 4, 32   # batch, seq, input_dim, outcome_dim, hidden_dim
    key = jax.random.PRNGKey(0)
    kx, kt, ky, ke, kp = jax.random.split(key, 5)

    x = jax.random.normal(kx, (B, S, Din), jnp.float32)
    t = (jax.random.uniform(kt, (B, S, 1)) > 0.5).astype(jnp.float32)
    y = jax.random.normal(ky, (B, S, Dy), jnp.float32)
    eps = jax.random.normal(ke, (B * S, H), jnp.float32)  # reparameterization noise
    params = init_params(kp, Din, Dy, H)

    out = cevae_forward(params, x, t, y, eps, hidden_dim=H, beta=1.0)
    jax.block_until_ready(out)
    x_recon, y_pred, t_pred, total_loss = out

    xr_r, yp_r, tp_r, loss_r = cevae_forward_ref(params, x, t, y, eps, H, beta=1.0)
    assert jnp.allclose(x_recon, xr_r, atol=2e-2, rtol=2e-2)
    assert jnp.allclose(y_pred, yp_r, atol=2e-2, rtol=2e-2)
    assert jnp.allclose(t_pred, tp_r, atol=1e-6)
    assert jnp.allclose(total_loss, loss_r, atol=2e-2, rtol=2e-2)
    assert bool(jnp.isfinite(total_loss))

    # Second config: non-divisible row count exercises padding/masking + multi-tile grid.
    B2, S2 = 3, 7
    kx2, kt2, ky2, ke2 = jax.random.split(jax.random.PRNGKey(1), 4)
    xb = jax.random.normal(kx2, (B2, S2, Din), jnp.float32)
    tb = (jax.random.uniform(kt2, (B2, S2, 1)) > 0.5).astype(jnp.float32)
    yb = jax.random.normal(ky2, (B2, S2, Dy), jnp.float32)
    eb = jax.random.normal(ke2, (B2 * S2, H), jnp.float32)
    out2 = cevae_forward(params, xb, tb, yb, eb, hidden_dim=H, beta=1.0, tile_rows=16)
    jax.block_until_ready(out2)
    xr2, yp2, tp2, loss2 = out2
    xr2_r, yp2_r, tp2_r, loss2_r = cevae_forward_ref(params, xb, tb, yb, eb, H, beta=1.0)
    assert jnp.allclose(xr2, xr2_r, atol=2e-2, rtol=2e-2)
    assert jnp.allclose(yp2, yp2_r, atol=2e-2, rtol=2e-2)
    assert jnp.allclose(loss2, loss2_r, atol=2e-2, rtol=2e-2)
    assert bool(jnp.isfinite(loss2))

    print("KERNEL_OK")
</pallas_src>

<mosaic_0001>
module attributes {stable_mosaic.version = 11 : i64} {
  func.func @kernel(%arg0: i32, %arg1: memref<16x21xf32, #tpu.memory_space<vmem>>, %arg2: memref<16x32xf32, #tpu.memory_space<vmem>>, %arg3: memref<21x32xf32, #tpu.memory_space<vmem>>, %arg4: memref<1x32xf32, #tpu.memory_space<vmem>>, %arg5: memref<32x32xf32, #tpu.memory_space<vmem>>, %arg6: memref<1x32xf32, #tpu.memory_space<vmem>>, %arg7: memref<32x64xf32, #tpu.memory_space<vmem>>, %arg8: memref<1x64xf32, #tpu.memory_space<vmem>>, %arg9: memref<32x32xf32, #tpu.memory_space<vmem>>, %arg10: memref<1x32xf32, #tpu.memory_space<vmem>>, %arg11: memref<32x32xf32, #tpu.memory_space<vmem>>, %arg12: memref<1x32xf32, #tpu.memory_space<vmem>>, %arg13: memref<32x16xf32, #tpu.memory_space<vmem>>, %arg14: memref<1x16xf32, #tpu.memory_space<vmem>>, %arg15: memref<32x64xf32, #tpu.memory_space<vmem>>, %arg16: memref<1x64xf32, #tpu.memory_space<vmem>>, %arg17: memref<32x4xf32, #tpu.memory_space<vmem>>, %arg18: memref<1x4xf32, #tpu.memory_space<vmem>>, %arg19: memref<32x4xf32, #tpu.memory_space<vmem>>, %arg20: memref<1x4xf32, #tpu.memory_space<vmem>>, %arg21: memref<6xf32, #tpu.memory_space<smem>>, %arg22: memref<16x16xf32, #tpu.memory_space<vmem>>, %arg23: memref<16x4xf32, #tpu.memory_space<vmem>>, %arg24: memref<8x128xf32, #tpu.memory_space<vmem>>) attributes {dimension_semantics = [#tpu.dimension_semantics<parallel>], iteration_bounds = array<i64: 1>, scalar_prefetch = 0 : i64, scratch_operands = 0 : i64, tpu.core_type = #tpu.core_type<tc>, window_params = [{transform_indices = @transform_0, window_bounds = array<i64: 16, 21>}, {transform_indices = @transform_1, window_bounds = array<i64: 16, 32>}, {pipeline_mode = #tpu.pipeline_mode<synchronous>, transform_indices = @transform_2, window_bounds = array<i64: 21, 32>}, {pipeline_mode = #tpu.pipeline_mode<synchronous>, transform_indices = @transform_3, window_bounds = array<i64: 1, 32>}, {pipeline_mode = #tpu.pipeline_mode<synchronous>, transform_indices = @transform_4, window_bounds = array<i64: 32, 32>}, {pipeline_mode = #tpu.pipeline_mode<synchronous>, transform_indices = @transform_5, window_bounds = array<i64: 1, 32>}, {pipeline_mode = #tpu.pipeline_mode<synchronous>, transform_indices = @transform_6, window_bounds = array<i64: 32, 64>}, {pipeline_mode = #tpu.pipeline_mode<synchronous>, transform_indices = @transform_7, window_bounds = array<i64: 1, 64>}, {pipeline_mode = #tpu.pipeline_mode<synchronous>, transform_indices = @transform_8, window_bounds = array<i64: 32, 32>}, {pipeline_mode = #tpu.pipeline_mode<synchronous>, transform_indices = @transform_9, window_bounds = array<i64: 1, 32>}, {pipeline_mode = #tpu.pipeline_mode<synchronous>, transform_indices = @transform_10, window_bounds = array<i64: 32, 32>}, {pipeline_mode = #tpu.pipeline_mode<synchronous>, transform_indices = @transform_11, window_bounds = array<i64: 1, 32>}, {pipeline_mode = #tpu.pipeline_mode<synchronous>, transform_indices = @transform_12, window_bounds = array<i64: 32, 16>}, {pipeline_mode = #tpu.pipeline_mode<synchronous>, transform_indices = @transform_13, window_bounds = array<i64: 1, 16>}, {pipeline_mode = #tpu.pipeline_mode<synchronous>, transform_indices = @transform_14, window_bounds = array<i64: 32, 64>}, {pipeline_mode = #tpu.pipeline_mode<synchronous>, transform_indices = @transform_15, window_bounds = array<i64: 1, 64>}, {pipeline_mode = #tpu.pipeline_mode<synchronous>, transform_indices = @transform_16, window_bounds = array<i64: 32, 4>}, {pipeline_mode = #tpu.pipeline_mode<synchronous>, transform_indices = @transform_17, window_bounds = array<i64: 1, 4>}, {pipeline_mode = #tpu.pipeline_mode<synchronous>, transform_indices = @transform_18, window_bounds = array<i64: 32, 4>}, {pipeline_mode = #tpu.pipeline_mode<synchronous>, transform_indices = @transform_19, window_bounds = array<i64: 1, 4>}, {transform_indices = @transform_20, window_bounds = array<i64: 6>}, {transform_indices = @transform_21, window_bounds = array<i64: 16, 16>}, {transform_indices = @transform_22, window_bounds = array<i64: 16, 4>}, {transform_indices = @transform_23, window_bounds = array<i64: 8, 128>}]} {
    %c0 = arith.constant 0 : index
    %c0_0 = arith.constant 0 : index
    %0 = vector.load %arg1[%c0, %c0_0] : memref<16x21xf32, #tpu.memory_space<vmem>>, vector<16x21xf32>
    %1 = vector.extract_strided_slice %0 {offsets = [0, 0], sizes = [16, 16], strides = [1, 1]} : vector<16x21xf32> to vector<16x16xf32>
    %2 = vector.extract_strided_slice %0 {offsets = [0, 16], sizes = [16, 1], strides = [1, 1]} : vector<16x21xf32> to vector<16x1xf32>
    %3 = vector.extract_strided_slice %0 {offsets = [0, 17], sizes = [16, 4], strides = [1, 1]} : vector<16x21xf32> to vector<16x4xf32>
    %c0_1 = arith.constant 0 : index
    %c0_2 = arith.constant 0 : index
    %4 = vector.load %arg2[%c0_1, %c0_2] : memref<16x32xf32, #tpu.memory_space<vmem>>, vector<16x32xf32>
    %c0_3 = arith.constant 0 : index
    %5 = memref.load %arg21[%c0_3] : memref<6xf32, #tpu.memory_space<smem>>
    %c1 = arith.constant 1 : index
    %6 = memref.load %arg21[%c1] : memref<6xf32, #tpu.memory_space<smem>>
    %c2 = arith.constant 2 : index
    %7 = memref.load %arg21[%c2] : memref<6xf32, #tpu.memory_space<smem>>
    %c3 = arith.constant 3 : index
    %8 = memref.load %arg21[%c3] : memref<6xf32, #tpu.memory_space<smem>>
    %c4 = arith.constant 4 : index
    %9 = memref.load %arg21[%c4] : memref<6xf32, #tpu.memory_space<smem>>
    %c5 = arith.constant 5 : index
    %10 = memref.load %arg21[%c5] : memref<6xf32, #tpu.memory_space<smem>>
    %cst = arith.constant 1.000000e+00 : f32
    %11 = arith.divf %cst, %5 : f32
    %cst_4 = arith.constant 1.000000e+00 : f32
    %12 = arith.divf %cst_4, %6 : f32
    %cst_5 = arith.constant 1.000000e+00 : f32
    %13 = arith.divf %cst_5, %7 : f32
    %cst_6 = arith.constant 1.000000e+00 : f32
    %14 = arith.divf %cst_6, %8 : f32
    %c0_7 = arith.constant 0 : index
    %c0_8 = arith.constant 0 : index
    %15 = vector.load %arg3[%c0_7, %c0_8] : memref<21x32xf32, #tpu.memory_space<vmem>>, vector<21x32xf32>
    %cst_9 = arith.constant dense<0.000000e+00> : vector<16x32xf32>
    %16 = tpu.matmul %0, %15, %cst_9 {dimension_numbers = #tpu.dot_dimension_numbers<[1], [0], [0], [1], [0, 0, 1, 1], [], []>} : vector<16x21xf32>, vector<21x32xf32>, vector<16x32xf32> -> vector<16x32xf32>
    %c0_10 = arith.constant 0 : index
    %c0_11 = arith.constant 0 : index
    %17 = vector.load %arg4[%c0_10, %c0_11] : memref<1x32xf32, #tpu.memory_space<vmem>>, vector<1x32xf32>
    %18 = vector.broadcast %17 : vector<1x32xf32> to vector<16x32xf32>
    %19 = arith.addf %16, %18 : vector<16x32xf32>
    %20 = vector.broadcast %11 : f32 to vector<16x32xf32>
    %21 = arith.mulf %19, %20 : vector<16x32xf32>
    %22 = math.tanh %21 : vector<16x32xf32>
    %23 = vector.broadcast %5 : f32 to vector<16x32xf32>
    %24 = arith.mulf %22, %23 : vector<16x32xf32>
    %c0_12 = arith.constant 0 : index
    %c0_13 = arith.constant 0 : index
    %25 = vector.load %arg5[%c0_12, %c0_13] : memref<32x32xf32, #tpu.memory_space<vmem>>, vector<32x32xf32>
    %cst_14 = arith.constant dense<0.000000e+00> : vector<16x32xf32>
    %26 = tpu.matmul %24, %25, %cst_14 {dimension_numbers = #tpu.dot_dimension_numbers<[1], [0], [0], [1], [0, 0, 1, 1], [], []>} : vector<16x32xf32>, vector<32x32xf32>, vector<16x32xf32> -> vector<16x32xf32>
    %c0_15 = arith.constant 0 : index
    %c0_16 = arith.constant 0 : index
    %27 = vector.load %arg6[%c0_15, %c0_16] : memref<1x32xf32, #tpu.memory_space<vmem>>, vector<1x32xf32>
    %28 = vector.broadcast %27 : vector<1x32xf32> to vector<16x32xf32>
    %29 = arith.addf %26, %28 : vector<16x32xf32>
    %30 = vector.broadcast %12 : f32 to vector<16x32xf32>
    %31 = arith.mulf %29, %30 : vector<16x32xf32>
    %32 = math.tanh %31 : vector<16x32xf32>
    %33 = vector.broadcast %6 : f32 to vector<16x32xf32>
    %34 = arith.mulf %32, %33 : vector<16x32xf32>
    %c0_17 = arith.constant 0 : index
    %c0_18 = arith.constant 0 : index
    %35 = vector.load %arg7[%c0_17, %c0_18] : memref<32x64xf32, #tpu.memory_space<vmem>>, vector<32x64xf32>
    %cst_19 = arith.constant dense<0.000000e+00> : vector<16x64xf32>
    %36 = tpu.matmul %34, %35, %cst_19 {dimension_numbers = #tpu.dot_dimension_numbers<[1], [0], [0], [1], [0, 0, 1, 1], [], []>} : vector<16x32xf32>, vector<32x64xf32>, vector<16x64xf32> -> vector<16x64xf32>
    %c0_20 = arith.constant 0 : index
    %c0_21 = arith.constant 0 : index
    %37 = vector.load %arg8[%c0_20, %c0_21] : memref<1x64xf32, #tpu.memory_space<vmem>>, vector<1x64xf32>
    %38 = vector.broadcast %37 : vector<1x64xf32> to vector<16x64xf32>
    %39 = arith.addf %36, %38 : vector<16x64xf32>
    %40 = vector.extract_strided_slice %39 {offsets = [0, 0], sizes = [16, 32], strides = [1, 1]} : vector<16x64xf32> to vector<16x32xf32>
    %41 = vector.extract_strided_slice %39 {offsets = [0, 32], sizes = [16, 32], strides = [1, 1]} : vector<16x64xf32> to vector<16x32xf32>
    %cst_22 = arith.constant 5.000000e-01 : f32
    %42 = vector.broadcast %cst_22 : f32 to vector<16x32xf32>
    %43 = arith.mulf %42, %41 : vector<16x32xf32>
    %44 = math.exp %43 : vector<16x32xf32>
    %45 = arith.mulf %4, %44 : vector<16x32xf32>
    %46 = arith.addf %40, %45 : vector<16x32xf32>
    %c0_23 = arith.constant 0 : index
    %c0_24 = arith.constant 0 : index
    %47 = vector.load %arg9[%c0_23, %c0_24] : memref<32x32xf32, #tpu.memory_space<vmem>>, vector<32x32xf32>
    %cst_25 = arith.constant dense<0.000000e+00> : vector<16x32xf32>
    %48 = tpu.matmul %46, %47, %cst_25 {dimension_numbers = #tpu.dot_dimension_numbers<[1], [0], [0], [1], [0, 0, 1, 1], [], []>} : vector<16x32xf32>, vector<32x32xf32>, vector<16x32xf32> -> vector<16x32xf32>
    %c0_26 = arith.constant 0 : index
    %c0_27 = arith.constant 0 : index
    %49 = vector.load %arg10[%c0_26, %c0_27] : memref<1x32xf32, #tpu.memory_space<vmem>>, vector<1x32xf32>
    %50 = vector.broadcast %49 : vector<1x32xf32> to vector<16x32xf32>
    %51 = arith.addf %48, %50 : vector<16x32xf32>
    %52 = vector.broadcast %13 : f32 to vector<16x32xf32>
    %53 = arith.mulf %51, %52 : vector<16x32xf32>
    %54 = math.tanh %53 : vector<16x32xf32>
    %55 = vector.broadcast %7 : f32 to vector<16x32xf32>
    %56 = arith.mulf %54, %55 : vector<16x32xf32>
    %c0_28 = arith.constant 0 : index
    %c0_29 = arith.constant 0 : index
    %57 = vector.load %arg11[%c0_28, %c0_29] : memref<32x32xf32, #tpu.memory_space<vmem>>, vector<32x32xf32>
    %cst_30 = arith.constant dense<0.000000e+00> : vector<16x32xf32>
    %58 = tpu.matmul %56, %57, %cst_30 {dimension_numbers = #tpu.dot_dimension_numbers<[1], [0], [0], [1], [0, 0, 1, 1], [], []>} : vector<16x32xf32>, vector<32x32xf32>, vector<16x32xf32> -> vector<16x32xf32>
    %c0_31 = arith.constant 0 : index
    %c0_32 = arith.constant 0 : index
    %59 = vector.load %arg12[%c0_31, %c0_32] : memref<1x32xf32, #tpu.memory_space<vmem>>, vector<1x32xf32>
    %60 = vector.broadcast %59 : vector<1x32xf32> to vector<16x32xf32>
    %61 = arith.addf %58, %60 : vector<16x32xf32>
    %62 = vector.broadcast %14 : f32 to vector<16x32xf32>
    %63 = arith.mulf %61, %62 : vector<16x32xf32>
    %64 = math.tanh %63 : vector<16x32xf32>
    %65 = vector.broadcast %8 : f32 to vector<16x32xf32>
    %66 = arith.mulf %64, %65 : vector<16x32xf32>
    %c0_33 = arith.constant 0 : index
    %c0_34 = arith.constant 0 : index
    %67 = vector.load %arg13[%c0_33, %c0_34] : memref<32x16xf32, #tpu.memory_space<vmem>>, vector<32x16xf32>
    %cst_35 = arith.constant dense<0.000000e+00> : vector<16x16xf32>
    %68 = tpu.matmul %66, %67, %cst_35 {dimension_numbers = #tpu.dot_dimension_numbers<[1], [0], [0], [1], [0, 0, 1, 1], [], []>} : vector<16x32xf32>, vector<32x16xf32>, vector<16x16xf32> -> vector<16x16xf32>
    %c0_36 = arith.constant 0 : index
    %c0_37 = arith.constant 0 : index
    %69 = vector.load %arg14[%c0_36, %c0_37] : memref<1x16xf32, #tpu.memory_space<vmem>>, vector<1x16xf32>
    %70 = vector.broadcast %69 : vector<1x16xf32> to vector<16x16xf32>
    %71 = arith.addf %68, %70 : vector<16x16xf32>
    %72 = tpu.iota {dimensions = array<i32: 1>} : vector<1x64xi32>
    %c32_i32 = arith.constant 32 : i32
    %73 = vector.broadcast %c32_i32 : i32 to vector<1x64xi32>
    %74 = arith.cmpi slt, %72, %73 : vector<1x64xi32>
    %75 = vector.broadcast %9 : f32 to vector<1x64xf32>
    %76 = vector.broadcast %10 : f32 to vector<1x64xf32>
    %77 = arith.select %74, %75, %76 : vector<1x64xi1>, vector<1x64xf32>
    %c32_i32_38 = arith.constant 32 : i32
    %78 = vector.broadcast %c32_i32_38 : i32 to vector<1x64xi32>
    %79 = arith.cmpi slt, %72, %78 : vector<1x64xi32>
    %cst_39 = arith.constant 1.000000e+00 : f32
    %80 = arith.divf %cst_39, %9 : f32
    %cst_40 = arith.constant 1.000000e+00 : f32
    %81 = arith.divf %cst_40, %10 : f32
    %82 = vector.broadcast %80 : f32 to vector<1x64xf32>
    %83 = vector.broadcast %81 : f32 to vector<1x64xf32>
    %84 = arith.select %79, %82, %83 : vector<1x64xi1>, vector<1x64xf32>
    %c0_41 = arith.constant 0 : index
    %c0_42 = arith.constant 0 : index
    %85 = vector.load %arg15[%c0_41, %c0_42] : memref<32x64xf32, #tpu.memory_space<vmem>>, vector<32x64xf32>
    %cst_43 = arith.constant dense<0.000000e+00> : vector<16x64xf32>
    %86 = tpu.matmul %46, %85, %cst_43 {dimension_numbers = #tpu.dot_dimension_numbers<[1], [0], [0], [1], [0, 0, 1, 1], [], []>} : vector<16x32xf32>, vector<32x64xf32>, vector<16x64xf32> -> vector<16x64xf32>
    %c0_44 = arith.constant 0 : index
    %c0_45 = arith.constant 0 : index
    %87 = vector.load %arg16[%c0_44, %c0_45] : memref<1x64xf32, #tpu.memory_space<vmem>>, vector<1x64xf32>
    %88 = vector.broadcast %87 : vector<1x64xf32> to vector<16x64xf32>
    %89 = arith.addf %86, %88 : vector<16x64xf32>
    %90 = vector.broadcast %84 : vector<1x64xf32> to vector<16x64xf32>
    %91 = arith.mulf %89, %90 : vector<16x64xf32>
    %92 = math.tanh %91 : vector<16x64xf32>
    %93 = vector.broadcast %77 : vector<1x64xf32> to vector<16x64xf32>
    %94 = arith.mulf %92, %93 : vector<16x64xf32>
    %95 = vector.extract_strided_slice %94 {offsets = [0, 0], sizes = [16, 32], strides = [1, 1]} : vector<16x64xf32> to vector<16x32xf32>
    %c0_46 = arith.constant 0 : index
    %c0_47 = arith.constant 0 : index
    %96 = vector.load %arg17[%c0_46, %c0_47] : memref<32x4xf32, #tpu.memory_space<vmem>>, vector<32x4xf32>
    %cst_48 = arith.constant dense<0.000000e+00> : vector<16x4xf32>
    %97 = tpu.matmul %95, %96, %cst_48 {dimension_numbers = #tpu.dot_dimension_numbers<[1], [0], [0], [1], [0, 0, 1, 1], [], []>} : vector<16x32xf32>, vector<32x4xf32>, vector<16x4xf32> -> vector<16x4xf32>
    %c0_49 = arith.constant 0 : index
    %c0_50 = arith.constant 0 : index
    %98 = vector.load %arg18[%c0_49, %c0_50] : memref<1x4xf32, #tpu.memory_space<vmem>>, vector<1x4xf32>
    %99 = vector.broadcast %98 : vector<1x4xf32> to vector<16x4xf32>
    %100 = arith.addf %97, %99 : vector<16x4xf32>
    %101 = vector.extract_strided_slice %94 {offsets = [0, 32], sizes = [16, 32], strides = [1, 1]} : vector<16x64xf32> to vector<16x32xf32>
    %c0_51 = arith.constant 0 : index
    %c0_52 = arith.constant 0 : index
    %102 = vector.load %arg19[%c0_51, %c0_52] : memref<32x4xf32, #tpu.memory_space<vmem>>, vector<32x4xf32>
    %cst_53 = arith.constant dense<0.000000e+00> : vector<16x4xf32>
    %103 = tpu.matmul %101, %102, %cst_53 {dimension_numbers = #tpu.dot_dimension_numbers<[1], [0], [0], [1], [0, 0, 1, 1], [], []>} : vector<16x32xf32>, vector<32x4xf32>, vector<16x4xf32> -> vector<16x4xf32>
    %c0_54 = arith.constant 0 : index
    %c0_55 = arith.constant 0 : index
    %104 = vector.load %arg20[%c0_54, %c0_55] : memref<1x4xf32, #tpu.memory_space<vmem>>, vector<1x4xf32>
    %105 = vector.broadcast %104 : vector<1x4xf32> to vector<16x4xf32>
    %106 = arith.addf %103, %105 : vector<16x4xf32>
    %107 = vector.broadcast %2 : vector<16x1xf32> to vector<16x4xf32>
    %108 = arith.mulf %107, %106 : vector<16x4xf32>
    %cst_56 = arith.constant 1.000000e+00 : f32
    %109 = vector.broadcast %cst_56 : f32 to vector<16x1xf32>
    %110 = arith.subf %109, %2 : vector<16x1xf32>
    %111 = vector.broadcast %110 : vector<16x1xf32> to vector<16x4xf32>
    %112 = arith.mulf %111, %100 : vector<16x4xf32>
    %113 = arith.addf %108, %112 : vector<16x4xf32>
    %c0_57 = arith.constant 0 : index
    %c0_58 = arith.constant 0 : index
    %114 = vector.load %arg22[%c0_57, %c0_58] : memref<16x16xf32, #tpu.memory_space<vmem>>, vector<16x16xf32>
    tpu.vector_store %arg22[%c0_57, %c0_58], %71 {strides = array<i32>} : memref<16x16xf32, #tpu.memory_space<vmem>>, vector<16x16xf32>,
    %c0_59 = arith.constant 0 : index
    %c0_60 = arith.constant 0 : index
    %115 = vector.load %arg23[%c0_59, %c0_60] : memref<16x4xf32, #tpu.memory_space<vmem>>, vector<16x4xf32>
    tpu.vector_store %arg23[%c0_59, %c0_60], %113 {strides = array<i32>} : memref<16x4xf32, #tpu.memory_space<vmem>>, vector<16x4xf32>,
    %116 = arith.subf %71, %1 : vector<16x16xf32>
    %117 = arith.mulf %116, %116 : vector<16x16xf32>
    %cst_61 = arith.constant 1.000000e+00 : f32
    %118 = vector.broadcast %cst_61 : f32 to vector<16x16xf32>
    %119 = arith.mulf %118, %117 : vector<16x16xf32>
    %120 = vector.shape_cast %119 : vector<16x16xf32> to vector<1x16x16xf32>
    %cst_62 = arith.constant dense<0.000000e+00> : vector<1xf32>
    %121 = vector.multi_reduction <add>, %120, %cst_62 [1, 2] : vector<1x16x16xf32> to vector<1xf32>
    %122 = vector.shape_cast %121 : vector<1xf32> to vector<1x1x1xf32>
    %123 = vector.extract %122[0, 0, 0] : f32 from vector<1x1x1xf32>
    %cst_63 = arith.constant 1.000000e+00 : f32
    %124 = vector.broadcast %cst_63 : f32 to vector<16x32xf32>
    %125 = arith.addf %124, %41 : vector<16x32xf32>
    %126 = arith.mulf %40, %40 : vector<16x32xf32>
    %127 = arith.subf %125, %126 : vector<16x32xf32>
    %128 = arith.mulf %44, %44 : vector<16x32xf32>
    %129 = arith.subf %127, %128 : vector<16x32xf32>
    %cst_64 = arith.constant -5.000000e-01 : f32
    %130 = vector.broadcast %cst_64 : f32 to vector<16x32xf32>
    %131 = arith.mulf %130, %129 : vector<16x32xf32>
    %cst_65 = arith.constant 1.000000e+00 : f32
    %132 = vector.broadcast %cst_65 : f32 to vector<16x32xf32>
    %133 = arith.mulf %132, %131 : vector<16x32xf32>
    %134 = vector.shape_cast %133 : vector<16x32xf32> to vector<1x16x32xf32>
    %cst_66 = arith.constant dense<0.000000e+00> : vector<1xf32>
    %135 = vector.multi_reduction <add>, %134, %cst_66 [1, 2] : vector<1x16x32xf32> to vector<1xf32>
    %136 = vector.shape_cast %135 : vector<1xf32> to vector<1x1x1xf32>
    %137 = vector.extract %136[0, 0, 0] : f32 from vector<1x1x1xf32>
    %138 = math.log %2 : vector<16x1xf32>
    %cst_67 = arith.constant -1.000000e+02 : f32
    %139 = vector.broadcast %cst_67 : f32 to vector<16x1xf32>
    %140 = arith.maximumf %138, %139 : vector<16x1xf32>
    %cst_68 = arith.constant 1.000000e+00 : f32
    %141 = vector.broadcast %cst_68 : f32 to vector<16x1xf32>
    %142 = arith.subf %141, %2 : vector<16x1xf32>
    %143 = math.log %142 : vector<16x1xf32>
    %cst_69 = arith.constant -1.000000e+02 : f32
    %144 = vector.broadcast %cst_69 : f32 to vector<16x1xf32>
    %145 = arith.maximumf %143, %144 : vector<16x1xf32>
    %146 = arith.mulf %2, %140 : vector<16x1xf32>
    %cst_70 = arith.constant 1.000000e+00 : f32
    %147 = vector.broadcast %cst_70 : f32 to vector<16x1xf32>
    %148 = arith.subf %147, %2 : vector<16x1xf32>
    %149 = arith.mulf %148, %145 : vector<16x1xf32>
    %150 = arith.addf %146, %149 : vector<16x1xf32>
    %cst_71 = arith.constant 0.000000e+00 : f32
    %151 = vector.broadcast %cst_71 : f32 to vector<16x1xf32>
    %152 = arith.subf %151, %150 : vector<16x1xf32>
    %cst_72 = arith.constant 1.000000e+00 : f32
    %153 = vector.broadcast %cst_72 : f32 to vector<16x1xf32>
    %154 = arith.mulf %153, %152 : vector<16x1xf32>
    %155 = vector.shape_cast %154 : vector<16x1xf32> to vector<1x16x1xf32>
    %cst_73 = arith.constant dense<0.000000e+00> : vector<1xf32>
    %156 = vector.multi_reduction <add>, %155, %cst_73 [1, 2] : vector<1x16x1xf32> to vector<1xf32>
    %157 = vector.shape_cast %156 : vector<1xf32> to vector<1x1x1xf32>
    %158 = vector.extract %157[0, 0, 0] : f32 from vector<1x1x1xf32>
    %159 = arith.subf %113, %3 : vector<16x4xf32>
    %160 = arith.mulf %159, %159 : vector<16x4xf32>
    %cst_74 = arith.constant 1.000000e+00 : f32
    %161 = vector.broadcast %cst_74 : f32 to vector<16x4xf32>
    %162 = arith.mulf %161, %160 : vector<16x4xf32>
    %163 = vector.shape_cast %162 : vector<16x4xf32> to vector<1x16x4xf32>
    %cst_75 = arith.constant dense<0.000000e+00> : vector<1xf32>
    %164 = vector.multi_reduction <add>, %163, %cst_75 [1, 2] : vector<1x16x4xf32> to vector<1xf32>
    %165 = vector.shape_cast %164 : vector<1xf32> to vector<1x1x1xf32>
    %166 = vector.extract %165[0, 0, 0] : f32 from vector<1x1x1xf32>
    %167 = tpu.iota {dimensions = array<i32: 0>} : vector<8x128xi32>
    %168 = tpu.iota {dimensions = array<i32: 1>} : vector<8x128xi32>
    %c0_i32 = arith.constant 0 : i32
    %169 = vector.broadcast %c0_i32 : i32 to vector<8x128xi32>
    %170 = arith.cmpi eq, %167, %169 : vector<8x128xi32>
    %c0_i32_76 = arith.constant 0 : i32
    %171 = vector.broadcast %c0_i32_76 : i32 to vector<8x128xi32>
    %172 = arith.cmpi eq, %168, %171 : vector<8x128xi32>
    %173 = arith.andi %170, %172 : vector<8x128xi1>
    %cst_77 = arith.constant 0.000000e+00 : f32
    %174 = vector.broadcast %123 : f32 to vector<8x128xf32>
    %175 = vector.broadcast %cst_77 : f32 to vector<8x128xf32>
    %176 = arith.select %173, %174, %175 : vector<8x128xi1>, vector<8x128xf32>
    %c0_i32_78 = arith.constant 0 : i32
    %177 = vector.broadcast %c0_i32_78 : i32 to vector<8x128xi32>
    %178 = arith.cmpi eq, %167, %177 : vector<8x128xi32>
    %c1_i32 = arith.constant 1 : i32
    %179 = vector.broadcast %c1_i32 : i32 to vector<8x128xi32>
    %180 = arith.cmpi eq, %168, %179 : vector<8x128xi32>
    %181 = arith.andi %178, %180 : vector<8x128xi1>
    %cst_79 = arith.constant 0.000000e+00 : f32
    %182 = vector.broadcast %137 : f32 to vector<8x128xf32>
    %183 = vector.broadcast %cst_79 : f32 to vector<8x128xf32>
    %184 = arith.select %181, %182, %183 : vector<8x128xi1>, vector<8x128xf32>
    %185 = arith.addf %176, %184 : vector<8x128xf32>
    %c0_i32_80 = arith.constant 0 : i32
    %186 = vector.broadcast %c0_i32_80 : i32 to vector<8x128xi32>
    %187 = arith.cmpi eq, %167, %186 : vector<8x128xi32>
    %c2_i32 = arith.constant 2 : i32
    %188 = vector.broadcast %c2_i32 : i32 to vector<8x128xi32>
    %189 = arith.cmpi eq, %168, %188 : vector<8x128xi32>
    %190 = arith.andi %187, %189 : vector<8x128xi1>
    %cst_81 = arith.constant 0.000000e+00 : f32
    %191 = vector.broadcast %158 : f32 to vector<8x128xf32>
    %192 = vector.broadcast %cst_81 : f32 to vector<8x128xf32>
    %193 = arith.select %190, %191, %192 : vector<8x128xi1>, vector<8x128xf32>
    %194 = arith.addf %185, %193 : vector<8x128xf32>
    %c0_i32_82 = arith.constant 0 : i32
    %195 = vector.broadcast %c0_i32_82 : i32 to vector<8x128xi32>
    %196 = arith.cmpi eq, %167, %195 : vector<8x128xi32>
    %c3_i32 = arith.constant 3 : i32
    %197 = vector.broadcast %c3_i32 : i32 to vector<8x128xi32>
    %198 = arith.cmpi eq, %168, %197 : vector<8x128xi32>
    %199 = arith.andi %196, %198 : vector<8x128xi1>
    %cst_83 = arith.constant 0.000000e+00 : f32
    %200 = vector.broadcast %166 : f32 to vector<8x128xf32>
    %201 = vector.broadcast %cst_83 : f32 to vector<8x128xf32>
    %202 = arith.select %199, %200, %201 : vector<8x128xi1>, vector<8x128xf32>
    %203 = arith.addf %194, %202 : vector<8x128xf32>
    %c0_84 = arith.constant 0 : index
    %c0_85 = arith.constant 0 : index
    %204 = vector.load %arg24[%c0_84, %c0_85] : memref<8x128xf32, #tpu.memory_space<vmem>>, vector<8x128xf32>
    tpu.vector_store %arg24[%c0_84, %c0_85], %203 {strides = array<i32>} : memref<8x128xf32, #tpu.memory_space<vmem>>, vector<8x128xf32>,
    return
  }
  func.func @transform_0(%arg0: i32) -> (i32, i32) {
    %c0_i32 = arith.constant 0 : i32
    %c0_i32_0 = arith.constant 0 : i32
    return %arg0, %c0_i32 : i32, i32
  }
  func.func @transform_1(%arg0: i32) -> (i32, i32) {
    %c0_i32 = arith.constant 0 : i32
    %c0_i32_0 = arith.constant 0 : i32
    return %arg0, %c0_i32 : i32, i32
  }
  func.func @transform_2(%arg0: i32) -> (i32, i32) {
    %c0_i32 = arith.constant 0 : i32
    %c0_i32_0 = arith.constant 0 : i32
    %c0_i32_1 = arith.constant 0 : i32
    return %c0_i32, %c0_i32_0 : i32, i32
  }
  func.func @transform_3(%arg0: i32) -> (i32, i32) {
    %c0_i32 = arith.constant 0 : i32
    %c0_i32_0 = arith.constant 0 : i32
    %c0_i32_1 = arith.constant 0 : i32
    return %c0_i32, %c0_i32_0 : i32, i32
  }
  func.func @transform_4(%arg0: i32) -> (i32, i32) {
    %c0_i32 = arith.constant 0 : i32
    %c0_i32_0 = arith.constant 0 : i32
    %c0_i32_1 = arith.constant 0 : i32
    return %c0_i32, %c0_i32_0 : i32, i32
  }
  func.func @transform_5(%arg0: i32) -> (i32, i32) {
    %c0_i32 = arith.constant 0 : i32
    %c0_i32_0 = arith.constant 0 : i32
    %c0_i32_1 = arith.constant 0 : i32
    return %c0_i32, %c0_i32_0 : i32, i32
  }
  func.func @transform_6(%arg0: i32) -> (i32, i32) {
    %c0_i32 = arith.constant 0 : i32
    %c0_i32_0 = arith.constant 0 : i32
    %c0_i32_1 = arith.constant 0 : i32
    return %c0_i32, %c0_i32_0 : i32, i32
  }
  func.func @transform_7(%arg0: i32) -> (i32, i32) {
    %c0_i32 = arith.constant 0 : i32
    %c0_i32_0 = arith.constant 0 : i32
    %c0_i32_1 = arith.constant 0 : i32
    return %c0_i32, %c0_i32_0 : i32, i32
  }
  func.func @transform_8(%arg0: i32) -> (i32, i32) {
    %c0_i32 = arith.constant 0 : i32
    %c0_i32_0 = arith.constant 0 : i32
    %c0_i32_1 = arith.constant 0 : i32
    return %c0_i32, %c0_i32_0 : i32, i32
  }
  func.func @transform_9(%arg0: i32) -> (i32, i32) {
    %c0_i32 = arith.constant 0 : i32
    %c0_i32_0 = arith.constant 0 : i32
    %c0_i32_1 = arith.constant 0 : i32
    return %c0_i32, %c0_i32_0 : i32, i32
  }
  func.func @transform_10(%arg0: i32) -> (i32, i32) {
    %c0_i32 = arith.constant 0 : i32
    %c0_i32_0 = arith.constant 0 : i32
    %c0_i32_1 = arith.constant 0 : i32
    return %c0_i32, %c0_i32_0 : i32, i32
  }
  func.func @transform_11(%arg0: i32) -> (i32, i32) {
    %c0_i32 = arith.constant 0 : i32
    %c0_i32_0 = arith.constant 0 : i32
    %c0_i32_1 = arith.constant 0 : i32
    return %c0_i32, %c0_i32_0 : i32, i32
  }
  func.func @transform_12(%arg0: i32) -> (i32, i32) {
    %c0_i32 = arith.constant 0 : i32
    %c0_i32_0 = arith.constant 0 : i32
    %c0_i32_1 = arith.constant 0 : i32
    return %c0_i32, %c0_i32_0 : i32, i32
  }
  func.func @transform_13(%arg0: i32) -> (i32, i32) {
    %c0_i32 = arith.constant 0 : i32
    %c0_i32_0 = arith.constant 0 : i32
    %c0_i32_1 = arith.constant 0 : i32
    return %c0_i32, %c0_i32_0 : i32, i32
  }
  func.func @transform_14(%arg0: i32) -> (i32, i32) {
    %c0_i32 = arith.constant 0 : i32
    %c0_i32_0 = arith.constant 0 : i32
    %c0_i32_1 = arith.constant 0 : i32
    return %c0_i32, %c0_i32_0 : i32, i32
  }
  func.func @transform_15(%arg0: i32) -> (i32, i32) {
    %c0_i32 = arith.constant 0 : i32
    %c0_i32_0 = arith.constant 0 : i32
    %c0_i32_1 = arith.constant 0 : i32
    return %c0_i32, %c0_i32_0 : i32, i32
  }
  func.func @transform_16(%arg0: i32) -> (i32, i32) {
    %c0_i32 = arith.constant 0 : i32
    %c0_i32_0 = arith.constant 0 : i32
    %c0_i32_1 = arith.constant 0 : i32
    return %c0_i32, %c0_i32_0 : i32, i32
  }
  func.func @transform_17(%arg0: i32) -> (i32, i32) {
    %c0_i32 = arith.constant 0 : i32
    %c0_i32_0 = arith.constant 0 : i32
    %c0_i32_1 = arith.constant 0 : i32
    return %c0_i32, %c0_i32_0 : i32, i32
  }
  func.func @transform_18(%arg0: i32) -> (i32, i32) {
    %c0_i32 = arith.constant 0 : i32
    %c0_i32_0 = arith.constant 0 : i32
    %c0_i32_1 = arith.constant 0 : i32
    return %c0_i32, %c0_i32_0 : i32, i32
  }
  func.func @transform_19(%arg0: i32) -> (i32, i32) {
    %c0_i32 = arith.constant 0 : i32
    %c0_i32_0 = arith.constant 0 : i32
    %c0_i32_1 = arith.constant 0 : i32
    return %c0_i32, %c0_i32_0 : i32, i32
  }
  func.func @transform_20(%arg0: i32) -> i32 {
    %c0_i32 = arith.constant 0 : i32
    %c0_i32_0 = arith.constant 0 : i32
    return %c0_i32 : i32
  }
  func.func @transform_21(%arg0: i32) -> (i32, i32) {
    %c0_i32 = arith.constant 0 : i32
    %c0_i32_0 = arith.constant 0 : i32
    return %arg0, %c0_i32 : i32, i32
  }
  func.func @transform_22(%arg0: i32) -> (i32, i32) {
    %c0_i32 = arith.constant 0 : i32
    %c0_i32_0 = arith.constant 0 : i32
    return %arg0, %c0_i32 : i32, i32
  }
  func.func @transform_23(%arg0: i32) -> (i32, i32) {
    %c0_i32 = arith.constant 0 : i32
    %c0_i32_0 = arith.constant 0 : i32
    return %arg0, %c0_i32 : i32, i32
  }
}

</mosaic_0001>

<llo_original>
// kernel: tpu_custom_call.1
$region0: #{tpu_custom_call.1}
  #allocation0 [shape = 'u32[]', space=smem, size = 0x4, offset = 0x4, fixed_abs, tag = 'smem constant byte address 0x4 - core index']
  #allocation1 [shape = 'u32[72,128]{1,0:T(1,128)}', space=vmem, size = 0x9000, scoped, tag = 'internal scratch']
  %s0 = inlined_call_operand.vmem [shape: f32[16,21], index: 0, kind: input, shape index: {}]
  %s1 = inlined_call_operand.hbm [shape: f32[16,32], index: 1, kind: input, shape index: {}]
  %s2 = inlined_call_operand.hbm [shape: f32[21,32], index: 2, kind: input, shape index: {}]
  %s3 = inlined_call_operand.vmem [shape: f32[1,32], index: 3, kind: input, shape index: {}]
  %s4 = inlined_call_operand.vmem [shape: f32[32,32], index: 4, kind: input, shape index: {}]
  %s5 = inlined_call_operand.vmem [shape: f32[1,32], index: 5, kind: input, shape index: {}]
  %s6 = inlined_call_operand.vmem [shape: f32[32,64], index: 6, kind: input, shape index: {}]
  %s7 = inlined_call_operand.vmem [shape: f32[1,64], index: 7, kind: input, shape index: {}]
  %s8 = inlined_call_operand.vmem [shape: f32[32,32], index: 8, kind: input, shape index: {}]
  %s9 = inlined_call_operand.vmem [shape: f32[1,32], index: 9, kind: input, shape index: {}]
  %s10 = inlined_call_operand.hbm [shape: f32[32,32], index: 10, kind: input, shape index: {}]
  %s11 = inlined_call_operand.vmem [shape: f32[1,32], index: 11, kind: input, shape index: {}]
  %s12 = inlined_call_operand.vmem [shape: f32[32,16], index: 12, kind: input, shape index: {}]
  %s13 = inlined_call_operand.vmem [shape: f32[1,16], index: 13, kind: input, shape index: {}]
  %s14 = inlined_call_operand.hbm [shape: f32[32,64], index: 14, kind: input, shape index: {}]
  %s15 = inlined_call_operand.vmem [shape: f32[1,64], index: 15, kind: input, shape index: {}]
  %s16 = inlined_call_operand.vmem [shape: f32[32,4], index: 16, kind: input, shape index: {}]
  %s17 = inlined_call_operand.vmem [shape: f32[1,4], index: 17, kind: input, shape index: {}]
  %s18 = inlined_call_operand.vmem [shape: f32[32,4], index: 18, kind: input, shape index: {}]
  %s19 = inlined_call_operand.vmem [shape: f32[1,4], index: 19, kind: input, shape index: {}]
  %s20 = inlined_call_operand.vmem [shape: f32[6], index: 20, kind: input, shape index: {}]
  %s21 = inlined_call_operand.hbm [shape: f32[16,16], index: 21, kind: output, shape index: {0}]
  %s22 = inlined_call_operand.vmem [shape: f32[16,4], index: 22, kind: output, shape index: {1}]
  %s23 = inlined_call_operand.hbm [shape: f32[8,128], index: 23, kind: output, shape index: {2}]
  %24 = xla_tuple %s21, %s22, %s23
  %s25 = sld [smem:[#allocation0]]
  $region130: #{tpu_custom_call.1} parent=0
    _
  %s27 = ssub.s32 1, %s25
  %s28 = scalar_select 0, %s27, %s25
  $region1: #{tpu_custom_call.1} parent=0
    #allocation2 [shape = 'u8[8192]{0}', space=vmem, size = 0x2000, scoped, tag = 'input window, operand 1, single buffered']
    #allocation3 [shape = 's32[1]{0}', space=sflag, size = 0x4, scoped, tag = 'scoped memory for tpu_custom_call.1']
    #allocation4 [shape = 's32[1]{0}', space=sflag, size = 0x4, scoped, tag = 'scoped memory for tpu_custom_call.1']
    #allocation5 [shape = 's32[1]{0}', space=sflag, size = 0x4, scoped, tag = 'scoped memory for tpu_custom_call.1']
    #allocation6 [shape = 'u8[12288]{0}', space=vmem, size = 0x3000, scoped, tag = 'input window, operand 2, single buffered']
    #allocation7 [shape = 's32[1]{0}', space=sflag, size = 0x4, scoped, tag = 'scoped memory for tpu_custom_call.1']
    #allocation8 [shape = 'u8[16384]{0}', space=vmem, size = 0x4000, scoped, tag = 'input window, operand 10, single buffered']
    #allocation9 [shape = 'u8[16384]{0}', space=vmem, size = 0x4000, scoped, tag = 'input window, operand 14, single buffered']
    #allocation10 [shape = 's32[1]{0}', space=sflag, size = 0x4, scoped, tag = 'scoped memory for tpu_custom_call.1']
    #allocation11 [shape = 'u8[512]{0}', space=smem, size = 0x200, scoped, tag = 'input window, operand 20, single buffered']
    #allocation12 [shape = 'u8[8192]{0}', space=vmem, size = 0x2000, scoped, tag = 'output window, operand 0, single buffered']
    #allocation13 [shape = 'u8[4096]{0}', space=vmem, size = 0x1000, scoped, tag = 'output window, operand 2, single buffered']
    #allocation14 [shape = 's32[1]{0}', space=sflag, size = 0x4, scoped, tag = 'scoped memory for tpu_custom_call.1']
    %29 = vsyncpa [#allocation3], 0
    %30 = vsyncpa [#allocation7], 0
    %31 = vsyncpa [#allocation10], 0
    %32 = vsyncpa [#allocation5], 0
    %33 = vsyncpa [#allocation4], 0
    %34 = vsyncpa [#allocation14], 0
    // Predicated region
    $region2: #{tpu_custom_call.1} parent=1 // pred_check
      _
    $region3: #{tpu_custom_call.1} parent=1 // pred_check_branch
      %36 = sbr.rel (0) target = $region5
    $region4: #{tpu_custom_call.1} parent=1 // pred_region
      _
    $region5: #{tpu_custom_call.1} parent=1 // pred_fallthru
      _
    // Predicated region
    $region6: #{tpu_custom_call.1} parent=1 // pred_check
      _
    $region7: #{tpu_custom_call.1} parent=1 // pred_check_branch
      %38 = sbr.rel (0) target = $region9
    $region8: #{tpu_custom_call.1} parent=1 // pred_region
      %40 = vsyncadd [#allocation3], 0
      %s41 = sshll.u32 %s1, 4
      %s42 = int_to_ptr.hbm [resolvable:$true] %s41
      %s43 = sshll.u32 [#allocation2], 4
      %s44 = int_to_ptr.vmem [resolvable:$true] %s43
      %49 = dma.hbm_to_vmem [thread:$0]  %s42, 256, %s44, [#allocation3], 128, 128, 8
    $region9: #{tpu_custom_call.1} parent=1 // pred_fallthru
      _
    // Predicated region
    $region10: #{tpu_custom_call.1} parent=1 // pred_check
      _
    $region11: #{tpu_custom_call.1} parent=1 // pred_check_branch
      %51 = sbr.rel (0) target = $region13
    $region12: #{tpu_custom_call.1} parent=1 // pred_region
      %53 = vsyncadd [#allocation7], 0
      %s54 = sshll.u32 %s2, 4
      %s55 = int_to_ptr.hbm [resolvable:$true] %s54
      %s56 = sshll.u32 [#allocation6], 4
      %s57 = int_to_ptr.vmem [resolvable:$true] %s56
      %62 = dma.hbm_to_vmem [thread:$0]  %s55, 384, %s57, [#allocation7], 128, 128, 8
    $region13: #{tpu_custom_call.1} parent=1 // pred_fallthru
      _
    // Predicated region
    $region14: #{tpu_custom_call.1} parent=1 // pred_check
      _
    $region15: #{tpu_custom_call.1} parent=1 // pred_check_branch
      %64 = sbr.rel (0) target = $region17
    $region16: #{tpu_custom_call.1} parent=1 // pred_region
      _
    $region17: #{tpu_custom_call.1} parent=1 // pred_fallthru
      _
    // Predicated region
    $region18: #{tpu_custom_call.1} parent=1 // pred_check
      _
    $region19: #{tpu_custom_call.1} parent=1 // pred_check_branch
      %66 = sbr.rel (0) target = $region21
    $region20: #{tpu_custom_call.1} parent=1 // pred_region
      _
    $region21: #{tpu_custom_call.1} parent=1 // pred_fallthru
      _
    // Predicated region
    $region22: #{tpu_custom_call.1} parent=1 // pred_check
      _
    $region23: #{tpu_custom_call.1} parent=1 // pred_check_branch
      %68 = sbr.rel (0) target = $region25
    $region24: #{tpu_custom_call.1} parent=1 // pred_region
      _
    $region25: #{tpu_custom_call.1} parent=1 // pred_fallthru
      _
    // Predicated region
    $region26: #{tpu_custom_call.1} parent=1 // pred_check
      _
    $region27: #{tpu_custom_call.1} parent=1 // pred_check_branch
      %70 = sbr.rel (0) target = $region29
    $region28: #{tpu_custom_call.1} parent=1 // pred_region
      _
    $region29: #{tpu_custom_call.1} parent=1 // pred_fallthru
      _
    // Predicated region
    $region30: #{tpu_custom_call.1} parent=1 // pred_check
      _
    $region31: #{tpu_custom_call.1} parent=1 // pred_check_branch
      %72 = sbr.rel (0) target = $region33
    $region32: #{tpu_custom_call.1} parent=1 // pred_region
      _
    $region33: #{tpu_custom_call.1} parent=1 // pred_fallthru
      _
    // Predicated region
    $region34: #{tpu_custom_call.1} parent=1 // pred_check
      _
    $region35: #{tpu_custom_call.1} parent=1 // pred_check_branch
      %74 = sbr.rel (0) target = $region37
    $region36: #{tpu_custom_call.1} parent=1 // pred_region
      _
    $region37: #{tpu_custom_call.1} parent=1 // pred_fallthru
      _
    // Predicated region
    $region38: #{tpu_custom_call.1} parent=1 // pred_check
      _
    $region39: #{tpu_custom_call.1} parent=1 // pred_check_branch
      %76 = sbr.rel (0) target = $region41
    $region40: #{tpu_custom_call.1} parent=1 // pred_region
      _
    $region41: #{tpu_custom_call.1} parent=1 // pred_fallthru
      _
    // Predicated region
    $region42: #{tpu_custom_call.1} parent=1 // pred_check
      _
    $region43: #{tpu_custom_call.1} parent=1 // pred_check_branch
      %78 = sbr.rel (0) target = $region45
    $region44: #{tpu_custom_call.1} parent=1 // pred_region
      %80 = vsyncadd [#allocation7], 0
      %s81 = sshll.u32 %s10, 4
      %s82 = int_to_ptr.hbm [resolvable:$true] %s81
      %s83 = sshll.u32 [#allocation8], 4
      %s84 = int_to_ptr.vmem [resolvable:$true] %s83
      %89 = dma.hbm_to_vmem [thread:$0]  %s82, 512, %s84, [#allocation7], 128, 128, 8
    $region45: #{tpu_custom_call.1} parent=1 // pred_fallthru
      _
    // Predicated region
    $region46: #{tpu_custom_call.1} parent=1 // pred_check
      _
    $region47: #{tpu_custom_call.1} parent=1 // pred_check_branch
      %91 = sbr.rel (0) target = $region49
    $region48: #{tpu_custom_call.1} parent=1 // pred_region
      _
    $region49: #{tpu_custom_call.1} parent=1 // pred_fallthru
      _
    // Predicated region
    $region50: #{tpu_custom_call.1} parent=1 // pred_check
      _
    $region51: #{tpu_custom_call.1} parent=1 // pred_check_branch
      %93 = sbr.rel (0) target = $region53
    $region52: #{tpu_custom_call.1} parent=1 // pred_region
      _
    $region53: #{tpu_custom_call.1} parent=1 // pred_fallthru
      _
    // Predicated region
    $region54: #{tpu_custom_call.1} parent=1 // pred_check
      _
    $region55: #{tpu_custom_call.1} parent=1 // pred_check_branch
      %95 = sbr.rel (0) target = $region57
    $region56: #{tpu_custom_call.1} parent=1 // pred_region
      _
    $region57: #{tpu_custom_call.1} parent=1 // pred_fallthru
      _
    // Predicated region
    $region58: #{tpu_custom_call.1} parent=1 // pred_check
      _
    $region59: #{tpu_custom_call.1} parent=1 // pred_check_branch
      %97 = sbr.rel (0) target = $region61
    $region60: #{tpu_custom_call.1} parent=1 // pred_region
      %99 = vsyncadd [#allocation10], 0
      %s100 = sshll.u32 %s14, 4
      %s101 = int_to_ptr.hbm [resolvable:$true] %s100
      %s102 = sshll.u32 [#allocation9], 4
      %s103 = int_to_ptr.vmem [resolvable:$true] %s102
      %108 = dma.hbm_to_vmem [thread:$0]  %s101, 512, %s103, [#allocation10], 128, 128, 8
    $region61: #{tpu_custom_call.1} parent=1 // pred_fallthru
      _
    // Predicated region
    $region62: #{tpu_custom_call.1} parent=1 // pred_check
      _
    $region63: #{tpu_custom_call.1} parent=1 // pred_check_branch
      %110 = sbr.rel (0) target = $region65
    $region64: #{tpu_custom_call.1} parent=1 // pred_region
      _
    $region65: #{tpu_custom_call.1} parent=1 // pred_fallthru
      _
    // Predicated region
    $region66: #{tpu_custom_call.1} parent=1 // pred_check
      _
    $region67: #{tpu_custom_call.1} parent=1 // pred_check_branch
      %112 = sbr.rel (0) target = $region69
    $region68: #{tpu_custom_call.1} parent=1 // pred_region
      _
    $region69: #{tpu_custom_call.1} parent=1 // pred_fallthru
      _
    // Predicated region
    $region70: #{tpu_custom_call.1} parent=1 // pred_check
      _
    $region71: #{tpu_custom_call.1} parent=1 // pred_check_branch
      %114 = sbr.rel (0) target = $region73
    $region72: #{tpu_custom_call.1} parent=1 // pred_region
      _
    $region73: #{tpu_custom_call.1} parent=1 // pred_fallthru
      _
    // Predicated region
    $region74: #{tpu_custom_call.1} parent=1 // pred_check
      _
    $region75: #{tpu_custom_call.1} parent=1 // pred_check_branch
      %116 = sbr.rel (0) target = $region77
    $region76: #{tpu_custom_call.1} parent=1 // pred_region
      _
    $region77: #{tpu_custom_call.1} parent=1 // pred_fallthru
      _
    // Predicated region
    $region78: #{tpu_custom_call.1} parent=1 // pred_check
      _
    $region79: #{tpu_custom_call.1} parent=1 // pred_check_branch
      %118 = sbr.rel (0) target = $region81
    $region80: #{tpu_custom_call.1} parent=1 // pred_region
      _
    $region81: #{tpu_custom_call.1} parent=1 // pred_fallthru
      _
    // Predicated region
    $region82: #{tpu_custom_call.1} parent=1 // pred_check
      _
    $region83: #{tpu_custom_call.1} parent=1 // pred_check_branch
      %120 = sbr.rel (0) target = $region85
    $region84: #{tpu_custom_call.1} parent=1 // pred_region
      %122 = vsyncadd [#allocation5], 0
      %s124 = sshll.u32 %s20, 4
      %s125 = int_to_ptr.vmem [resolvable:$true] %s124
      %127 = dma.vmem_to_smem %s125, 16, [#allocation11], [#allocation5]
    $region85: #{tpu_custom_call.1} parent=1 // pred_fallthru
      _
    // Predicated region
    $region86: #{tpu_custom_call.1} parent=1 // pred_check
      _
    $region87: #{tpu_custom_call.1} parent=1 // pred_check_branch
      %129 = sbr.rel (0) target = $region89
    $region88: #{tpu_custom_call.1} parent=1 // pred_region
      %131 = dma.done [#allocation3], 256
    $region89: #{tpu_custom_call.1} parent=1 // pred_fallthru
      _
    // Predicated region
    $region90: #{tpu_custom_call.1} parent=1 // pred_check
      _
    $region91: #{tpu_custom_call.1} parent=1 // pred_check_branch
      %133 = sbr.rel (0) target = $region93
    $region92: #{tpu_custom_call.1} parent=1 // pred_region
      %135 = dma.done [#allocation7], 384
    $region93: #{tpu_custom_call.1} parent=1 // pred_fallthru
      _
    // Predicated region
    $region94: #{tpu_custom_call.1} parent=1 // pred_check
      _
    $region95: #{tpu_custom_call.1} parent=1 // pred_check_branch
      %137 = sbr.rel (0) target = $region97
    $region96: #{tpu_custom_call.1} parent=1 // pred_region
      %139 = dma.done [#allocation7], 512
    $region97: #{tpu_custom_call.1} parent=1 // pred_fallthru
      _
    // Predicated region
    $region98: #{tpu_custom_call.1} parent=1 // pred_check
      _
    $region99: #{tpu_custom_call.1} parent=1 // pred_check_branch
      %141 = sbr.rel (0) target = $region101
    $region100: #{tpu_custom_call.1} parent=1 // pred_region
      %143 = dma.done [#allocation10], 512
    $region101: #{tpu_custom_call.1} parent=1 // pred_fallthru
      _
    // Predicated region
    $region102: #{tpu_custom_call.1} parent=1 // pred_check
      _
    $region103: #{tpu_custom_call.1} parent=1 // pred_check_branch
      %145 = sbr.rel (0) target = $region105
    $region104: #{tpu_custom_call.1} parent=1 // pred_region
      %147 = dma.done [#allocation5], 16
    $region105: #{tpu_custom_call.1} parent=1 // pred_fallthru
      _
    %148 = sfence
    %v149 = vld [vmem:[%s0] sm:$0xff]
    %v150 = vld [vmem:[%s0 + $0x8] sm:$0xff]
    %v151 = vld [vmem:[#allocation2] sm:$0xff]
    %v152 = vld [vmem:[#allocation2 + $0x8] sm:$0xff]
    %s153 = sld [smem:[#allocation11]]
    %s154 = sld [smem:[#allocation11 + $0x1]]
    %s155 = sld [smem:[#allocation11 + $0x2]]
    %s156 = sld [smem:[#allocation11 + $0x3]]
    %s157 = sld [smem:[#allocation11 + $0x4]]
    %s158 = sld [smem:[#allocation11 + $0x5]]
    %v159 = vstv %s153
    %v160 = vrcp.pop %v159
    %v161 = vmul.f32 %v159, %v160
    %v162 = vsub.f32 1.0, %v161
    %v163 = vmul.f32 %v160, %v162
    %v164 = vadd.f32 %v160, %v163
    %vm165 = vweird.f32 %v159
    %vm166 = vweird.f32 %v160
    %vm167 = vmor %vm165, %vm166
    %v168 = vsel %vm167, %v160, %v164
    %v169 = vand.u32 2147483647, %v159
    %vm170 = vcmp.eq.f32.partialorder %v169, 8.507059e+37
    %v171 = vand.u32 %v159, 2147483648
    %v172 = vor.u32 1.1754944e-38, %v171
    %v173 = vsel %vm170, %v172, %v168
    %s174 = vtos %v173
    %v175 = vstv %s154
    %v176 = vrcp.pop %v175
    %v177 = vmul.f32 %v175, %v176
    %v178 = vsub.f32 1.0, %v177
    %v179 = vmul.f32 %v176, %v178
    %v180 = vadd.f32 %v176, %v179
    %vm181 = vweird.f32 %v175
    %vm182 = vweird.f32 %v176
    %vm183 = vmor %vm181, %vm182
    %v184 = vsel %vm183, %v176, %v180
    %v185 = vand.u32 2147483647, %v175
    %vm186 = vcmp.eq.f32.partialorder %v185, 8.507059e+37
    %v187 = vand.u32 %v175, 2147483648
    %v188 = vor.u32 1.1754944e-38, %v187
    %v189 = vsel %vm186, %v188, %v184
    %s190 = vtos %v189
    %v191 = vstv %s155
    %v192 = vrcp.pop %v191
    %v193 = vmul.f32 %v191, %v192
    %v194 = vsub.f32 1.0, %v193
    %v195 = vmul.f32 %v192, %v194
    %v196 = vadd.f32 %v192, %v195
    %vm197 = vweird.f32 %v191
    %vm198 = vweird.f32 %v192
    %vm199 = vmor %vm197, %vm198
    %v200 = vsel %vm199, %v192, %v196
    %v201 = vand.u32 2147483647, %v191
    %vm202 = vcmp.eq.f32.partialorder %v201, 8.507059e+37
    %v203 = vand.u32 %v191, 2147483648
    %v204 = vor.u32 1.1754944e-38, %v203
    %v205 = vsel %vm202, %v204, %v200
    %s206 = vtos %v205
    %v207 = vstv %s156
    %v208 = vrcp.pop %v207
    %v209 = vmul.f32 %v207, %v208
    %v210 = vsub.f32 1.0, %v209
    %v211 = vmul.f32 %v208, %v210
    %v212 = vadd.f32 %v208, %v211
    %vm213 = vweird.f32 %v207
    %vm214 = vweird.f32 %v208
    %vm215 = vmor %vm213, %vm214
    %v216 = vsel %vm215, %v208, %v212
    %v217 = vand.u32 2147483647, %v207
    %vm218 = vcmp.eq.f32.partialorder %v217, 8.507059e+37
    %v219 = vand.u32 %v207, 2147483648
    %v220 = vor.u32 1.1754944e-38, %v219
    %v221 = vsel %vm218, %v220, %v216
    %s222 = vtos %v221
    %v223 = vld [vmem:[#allocation6] sm:$0xff]
    %v224 = vld [vmem:[#allocation6 + $0x8] sm:$0xff]
    %v225 = vld [vmem:[#allocation6 + $0x10] sm:$0x1f]
    %v226 = vld [vmem:[%s3] sm:$0x1]
    %v228 = vperm.slane %v226, 0
    %vm230 = vcmask 171008
    %v232 = vsel %vm230, %v149, 0
    %v235 = vsel %vm230, %v150, 0
    %vm237 = vcmask 1044480
    %v239 = vsel %vm237, %v225, 0
    %241 = vmatpush.msra.mxu0 0.0
    %242 = vmatpush.msra.mxu0 0.0
    %243 = vmatpush.msra.mxu0 0.0
    %244 = vmatpush.msra.mxu0 0.0
    %245 = vmatpush.msra.mxu0 0.0
    %246 = vmatpush.msra.mxu0 0.0
    %247 = vmatpush.msra.mxu0 0.0
    %248 = vmatpush.msra.mxu0 0.0
    %249 = vmatpush.msra.mxu0 0.0
    %250 = vmatpush.msra.mxu0 0.0
    %251 = vmatpush.msra.mxu0 0.0
    %252 = vmatpush.msra.mxu0 0.0
    %253 = vmatpush.msra.mxu0 0.0
    %254 = vmatpush.msra.mxu0 %v239
    %255 = vmatpush.msra.mxu0 %v224
    %256 = vmatpush.msra.mxu0 %v223
    %257 = vmatmul.f32.gmra.mxu0 %v232
    %v258 = vpop.f32.mrf.mxu0
    %v259 = vadd.f32 %v228, %v258
    %260 = vmatmul.f32.gmra.mxu0 %v235
    %v261 = vpop.f32.mrf.mxu0
    %v262 = vadd.f32 %v228, %v261
    %263 = vdwg.mxu0
    %v264 = vstv %s174
    %v265 = vmul.f32 %v259, %v264
    %v266 = vmul.f32 %v262, %v264
    %v267 = vtanh.pop %v265
    %v268 = vtanh.pop %v266
    %v269 = vstv %s153
    %v270 = vmul.f32 %v267, %v269
    %v271 = vmul.f32 %v268, %v269
    %v272 = vld [vmem:[%s4] sm:$0xff]
    %v273 = vld [vmem:[%s4 + $0x8] sm:$0xff]
    %v274 = vld [vmem:[%s4 + $0x10] sm:$0xff]
    %v275 = vld [vmem:[%s4 + $0x18] sm:$0xff]
    %v276 = vld [vmem:[%s5] sm:$0x1]
    %v278 = vperm.slane %v276, 0
    %vm280 = vcmask 261120
    %v282 = vsel %vm280, %v270, 0
    %v285 = vsel %vm280, %v271, 0
    %287 = vmatpush.msra.mxu0 0.0
    %288 = vmatpush.msra.mxu0 0.0
    %289 = vmatpush.msra.mxu0 0.0
    %290 = vmatpush.msra.mxu0 0.0
    %291 = vmatpush.msra.mxu0 0.0
    %292 = vmatpush.msra.mxu0 0.0
    %293 = vmatpush.msra.mxu0 0.0
    %294 = vmatpush.msra.mxu0 0.0
    %295 = vmatpush.msra.mxu0 0.0
    %296 = vmatpush.msra.mxu0 0.0
    %297 = vmatpush.msra.mxu0 0.0
    %298 = vmatpush.msra.mxu0 0.0
    %299 = vmatpush.msra.mxu0 %v275
    %300 = vmatpush.msra.mxu0 %v274
    %301 = vmatpush.msra.mxu0 %v273
    %302 = vmatpush.msra.mxu0 %v272
    %303 = vmatmul.f32.gmra.mxu0 %v282
    %v304 = vpop.f32.mrf.mxu0
    %v305 = vadd.f32 %v278, %v304
    %306 = vmatmul.f32.gmra.mxu0 %v285
    %v307 = vpop.f32.mrf.mxu0
    %v308 = vadd.f32 %v278, %v307
    %309 = vdwg.mxu0
    %v310 = vstv %s190
    %v311 = vmul.f32 %v305, %v310
    %v312 = vmul.f32 %v308, %v310
    %v313 = vtanh.pop %v311
    %v314 = vtanh.pop %v312
    %v315 = vstv %s154
    %v316 = vmul.f32 %v313, %v315
    %v317 = vmul.f32 %v314, %v315
    %v318 = vld [vmem:[%s6] sm:$0xff]
    %v319 = vld [vmem:[%s6 + $0x8] sm:$0xff]
    %v320 = vld [vmem:[%s6 + $0x10] sm:$0xff]
    %v321 = vld [vmem:[%s6 + $0x18] sm:$0xff]
    %v322 = vld [vmem:[%s7] sm:$0x1]
    %v324 = vperm.slane %v322, 0
    %v327 = vsel %vm280, %v316, 0
    %v330 = vsel %vm280, %v317, 0
    %332 = vmatpush.msra.mxu0 0.0
    %333 = vmatpush.msra.mxu0 0.0
    %334 = vmatpush.msra.mxu0 0.0
    %335 = vmatpush.msra.mxu0 0.0
    %336 = vmatpush.msra.mxu0 0.0
    %337 = vmatpush.msra.mxu0 0.0
    %338 = vmatpush.msra.mxu0 0.0
    %339 = vmatpush.msra.mxu0 0.0
    %340 = vmatpush.msra.mxu0 0.0
    %341 = vmatpush.msra.mxu0 0.0
    %342 = vmatpush.msra.mxu0 0.0
    %343 = vmatpush.msra.mxu0 0.0
    %344 = vmatpush.msra.mxu0 %v321
    %345 = vmatpush.msra.mxu0 %v320
    %346 = vmatpush.msra.mxu0 %v319
    %347 = vmatpush.msra.mxu0 %v318
    %348 = vmatmul.f32.gmra.mxu0 %v327
    %v349 = vpop.f32.mrf.mxu0
    %v350 = vadd.f32 %v324, %v349
    %351 = vmatmul.f32.gmra.mxu0 %v330
    %v352 = vpop.f32.mrf.mxu0
    %v353 = vadd.f32 %v324, %v352
    %354 = vdwg.mxu0
    %v355 = vmul.f32 %v350, 0.5
    %v356 = vmul.f32 %v353, 0.5
    %v357 = vmul.f32 %v355, 1.442695
    %v358 = vpow.pop %v357
    %v359 = vmul.f32 %v356, 1.442695
    %v360 = vpow.pop %v359
    %363 = vrot.lane.b32.xlu0 %v358, 96
    %v364 = vpop.permute.xlu0 %363
    %365 = vrot.lane.b32.xlu0 %v360, 96
    %v366 = vpop.permute.xlu0 %365
    %v369 = vmul.f32 %v151, %v364
    %v370 = vmul.f32 %v152, %v366
    %v371 = vadd.f32 %v350, %v369
    %v372 = vadd.f32 %v353, %v370
    %v373 = vld [vmem:[%s8] sm:$0xff]
    %v374 = vld [vmem:[%s8 + $0x8] sm:$0xff]
    %v375 = vld [vmem:[%s8 + $0x10] sm:$0xff]
    %v376 = vld [vmem:[%s8 + $0x18] sm:$0xff]
    %v377 = vld [vmem:[%s9] sm:$0x1]
    %v379 = vperm.slane %v377, 0
    %v382 = vsel %vm280, %v371, 0
    %v385 = vsel %vm280, %v372, 0
    %387 = vmatpush.msra.mxu0 0.0
    %388 = vmatpush.msra.mxu0 0.0
    %389 = vmatpush.msra.mxu0 0.0
    %390 = vmatpush.msra.mxu0 0.0
    %391 = vmatpush.msra.mxu0 0.0
    %392 = vmatpush.msra.mxu0 0.0
    %393 = vmatpush.msra.mxu0 0.0
    %394 = vmatpush.msra.mxu0 0.0
    %395 = vmatpush.msra.mxu0 0.0
    %396 = vmatpush.msra.mxu0 0.0
    %397 = vmatpush.msra.mxu0 0.0
    %398 = vmatpush.msra.mxu0 0.0
    %399 = vmatpush.msra.mxu0 %v376
    %400 = vmatpush.msra.mxu0 %v375
    %401 = vmatpush.msra.mxu0 %v374
    %402 = vmatpush.msra.mxu0 %v373
    %403 = vmatmul.f32.gmra.mxu0 %v382
    %v404 = vpop.f32.mrf.mxu0
    %v405 = vadd.f32 %v379, %v404
    %406 = vmatmul.f32.gmra.mxu0 %v385
    %v407 = vpop.f32.mrf.mxu0
    %v408 = vadd.f32 %v379, %v407
    %409 = vdwg.mxu0
    %v410 = vstv %s206
    %v411 = vmul.f32 %v405, %v410
    %v412 = vmul.f32 %v408, %v410
    %v413 = vtanh.pop %v411
    %v414 = vtanh.pop %v412
    %v415 = vstv %s155
    %v416 = vmul.f32 %v413, %v415
    %v417 = vmul.f32 %v414, %v415
    %v418 = vld [vmem:[#allocation8] sm:$0xff]
    %v419 = vld [vmem:[#allocation8 + $0x8] sm:$0xff]
    %v420 = vld [vmem:[#allocation8 + $0x10] sm:$0xff]
    %v421 = vld [vmem:[#allocation8 + $0x18] sm:$0xff]
    %v422 = vld [vmem:[%s11] sm:$0x1]
    %v424 = vperm.slane %v422, 0
    %v427 = vsel %vm280, %v416, 0
    %v430 = vsel %vm280, %v417, 0
    %432 = vmatpush.msra.mxu0 0.0
    %433 = vmatpush.msra.mxu0 0.0
    %434 = vmatpush.msra.mxu0 0.0
    %435 = vmatpush.msra.mxu0 0.0
    %436 = vmatpush.msra.mxu0 0.0
    %437 = vmatpush.msra.mxu0 0.0
    %438 = vmatpush.msra.mxu0 0.0
    %439 = vmatpush.msra.mxu0 0.0
    %440 = vmatpush.msra.mxu0 0.0
    %441 = vmatpush.msra.mxu0 0.0
    %442 = vmatpush.msra.mxu0 0.0
    %443 = vmatpush.msra.mxu0 0.0
    %444 = vmatpush.msra.mxu0 %v421
    %445 = vmatpush.msra.mxu0 %v420
    %446 = vmatpush.msra.mxu0 %v419
    %447 = vmatpush.msra.mxu0 %v418
    %448 = vmatmul.f32.gmra.mxu0 %v427
    %v449 = vpop.f32.mrf.mxu0
    %v450 = vadd.f32 %v424, %v449
    %451 = vmatmul.f32.gmra.mxu0 %v430
    %v452 = vpop.f32.mrf.mxu0
    %v453 = vadd.f32 %v424, %v452
    %454 = vdwg.mxu0
    %v455 = vstv %s222
    %v456 = vmul.f32 %v450, %v455
    %v457 = vmul.f32 %v453, %v455
    %v458 = vtanh.pop %v456
    %v459 = vtanh.pop %v457
    %v460 = vstv %s156
    %v461 = vmul.f32 %v458, %v460
    %v462 = vmul.f32 %v459, %v460
    %v463 = vld [vmem:[%s12] sm:$0xff]
    %v464 = vld [vmem:[%s12 + $0x8] sm:$0xff]
    %v465 = vld [vmem:[%s12 + $0x10] sm:$0xff]
    %v466 = vld [vmem:[%s12 + $0x18] sm:$0xff]
    %v467 = vld [vmem:[%s13] sm:$0x1]
    %v469 = vperm.slane %v467, 0
    %v472 = vsel %vm280, %v461, 0
    %v475 = vsel %vm280, %v462, 0
    %477 = vmatpush.msra.mxu0 0.0
    %478 = vmatpush.msra.mxu0 0.0
    %479 = vmatpush.msra.mxu0 0.0
    %480 = vmatpush.msra.mxu0 0.0
    %481 = vmatpush.msra.mxu0 0.0
    %482 = vmatpush.msra.mxu0 0.0
    %483 = vmatpush.msra.mxu0 0.0
    %484 = vmatpush.msra.mxu0 0.0
    %485 = vmatpush.msra.mxu0 0.0
    %486 = vmatpush.msra.mxu0 0.0
    %487 = vmatpush.msra.mxu0 0.0
    %488 = vmatpush.msra.mxu0 0.0
    %489 = vmatpush.msra.mxu0 %v466
    %490 = vmatpush.msra.mxu0 %v465
    %491 = vmatpush.msra.mxu0 %v464
    %492 = vmatpush.msra.mxu0 %v463
    %493 = vmatmul.f32.gmra.mxu0 %v472
    %v494 = vpop.f32.mrf.mxu0
    %v495 = vadd.f32 %v469, %v494
    %496 = vmatmul.f32.gmra.mxu0 %v475
    %v497 = vpop.f32.mrf.mxu0
    %v498 = vadd.f32 %v469, %v497
    %499 = vdwg.mxu0
    %v500 = vlaneseq
    %v501 = vand.u32 %v500, 127
    %vm502 = vcmp.lt.s32.totalorder %v501, 32
    %v503 = vstv %s157
    %v504 = vstv %s158
    %v505 = vsel %vm502, %v503, %v504
    %v506 = vstv %s157
    %v507 = vrcp.pop %v506
    %v508 = vmul.f32 %v506, %v507
    %v509 = vsub.f32 1.0, %v508
    %v510 = vmul.f32 %v507, %v509
    %v511 = vadd.f32 %v507, %v510
    %vm512 = vweird.f32 %v506
    %vm513 = vweird.f32 %v507
    %vm514 = vmor %vm512, %vm513
    %v515 = vsel %vm514, %v507, %v511
    %v516 = vand.u32 2147483647, %v506
    %vm517 = vcmp.eq.f32.partialorder %v516, 8.507059e+37
    %v518 = vand.u32 %v506, 2147483648
    %v519 = vor.u32 1.1754944e-38, %v518
    %v520 = vsel %vm517, %v519, %v515
    %s521 = vtos %v520
    %v522 = vstv %s158
    %v523 = vrcp.pop %v522
    %v524 = vmul.f32 %v522, %v523
    %v525 = vsub.f32 1.0, %v524
    %v526 = vmul.f32 %v523, %v525
    %v527 = vadd.f32 %v523, %v526
    %vm528 = vweird.f32 %v522
    %vm529 = vweird.f32 %v523
    %vm530 = vmor %vm528, %vm529
    %v531 = vsel %vm530, %v523, %v527
    %v532 = vand.u32 2147483647, %v522
    %vm533 = vcmp.eq.f32.partialorder %v532, 8.507059e+37
    %v534 = vand.u32 %v522, 2147483648
    %v535 = vor.u32 1.1754944e-38, %v534
    %v536 = vsel %vm533, %v535, %v531
    %s537 = vtos %v536
    %v538 = vstv %s521
    %v539 = vstv %s537
    %v540 = vsel %vm502, %v538, %v539
    %v541 = vld [vmem:[#allocation9] sm:$0xff]
    %v542 = vld [vmem:[#allocation9 + $0x8] sm:$0xff]
    %v543 = vld [vmem:[#allocation9 + $0x10] sm:$0xff]
    %v544 = vld [vmem:[#allocation9 + $0x18] sm:$0xff]
    %v545 = vld [vmem:[%s15] sm:$0x1]
    %v547 = vperm.slane %v545, 0
    %549 = vmatpush.msra.mxu0 0.0
    %550 = vmatpush.msra.mxu0 0.0
    %551 = vmatpush.msra.mxu0 0.0
    %552 = vmatpush.msra.mxu0 0.0
    %553 = vmatpush.msra.mxu0 0.0
    %554 = vmatpush.msra.mxu0 0.0
    %555 = vmatpush.msra.mxu0 0.0
    %556 = vmatpush.msra.mxu0 0.0
    %557 = vmatpush.msra.mxu0 0.0
    %558 = vmatpush.msra.mxu0 0.0
    %559 = vmatpush.msra.mxu0 0.0
    %560 = vmatpush.msra.mxu0 0.0
    %561 = vmatpush.msra.mxu0 %v544
    %562 = vmatpush.msra.mxu0 %v543
    %563 = vmatpush.msra.mxu0 %v542
    %564 = vmatpush.msra.mxu0 %v541
    %565 = vmatmul.f32.gmra.mxu0 %v382
    %v566 = vpop.f32.mrf.mxu0
    %v567 = vadd.f32 %v547, %v566
    %568 = vmatmul.f32.gmra.mxu0 %v385
    %v569 = vpop.f32.mrf.mxu0
    %v570 = vadd.f32 %v547, %v569
    %571 = vdwg.mxu0
    %v572 = vmul.f32 %v567, %v540
    %v573 = vmul.f32 %v570, %v540
    %v574 = vtanh.pop %v572
    %v575 = vtanh.pop %v573
    %v576 = vmul.f32 %v574, %v505
    %v577 = vmul.f32 %v575, %v505
    %v578 = vld [vmem:[%s16] sm:$0xff]
    %v579 = vld [vmem:[%s16 + $0x8] sm:$0xff]
    %v580 = vld [vmem:[%s16 + $0x10] sm:$0xff]
    %v581 = vld [vmem:[%s16 + $0x18] sm:$0xff]
    %v582 = vld [vmem:[%s17] sm:$0x1]
    %v584 = vperm.slane %v582, 0
    %v587 = vsel %vm280, %v576, 0
    %v590 = vsel %vm280, %v577, 0
    %592 = vmatpush.msra.mxu0 0.0
    %593 = vmatpush.msra.mxu0 0.0
    %594 = vmatpush.msra.mxu0 0.0
    %595 = vmatpush.msra.mxu0 0.0
    %596 = vmatpush.msra.mxu0 0.0
    %597 = vmatpush.msra.mxu0 0.0
    %598 = vmatpush.msra.mxu0 0.0
    %599 = vmatpush.msra.mxu0 0.0
    %600 = vmatpush.msra.mxu0 0.0
    %601 = vmatpush.msra.mxu0 0.0
    %602 = vmatpush.msra.mxu0 0.0
    %603 = vmatpush.msra.mxu0 0.0
    %604 = vmatpush.msra.mxu0 %v581
    %605 = vmatpush.msra.mxu0 %v580
    %606 = vmatpush.msra.mxu0 %v579
    %607 = vmatpush.msra.mxu0 %v578
    %608 = vmatmul.f32.gmra.mxu0 %v587
    %v609 = vpop.f32.mrf.mxu0
    %v610 = vadd.f32 %v584, %v609
    %611 = vmatmul.f32.gmra.mxu0 %v590
    %v612 = vpop.f32.mrf.mxu0
    %v613 = vadd.f32 %v584, %v612
    %614 = vdwg.mxu0
    %v615 = vld [vmem:[%s18] sm:$0xff]
    %v616 = vld [vmem:[%s18 + $0x8] sm:$0xff]
    %v617 = vld [vmem:[%s18 + $0x10] sm:$0xff]
    %v618 = vld [vmem:[%s18 + $0x18] sm:$0xff]
    %v619 = vld [vmem:[%s19] sm:$0x1]
    %v621 = vperm.slane %v619, 0
    %623 = vrot.lane.b32.xlu0 %v576, 96
    %v624 = vpop.permute.xlu0 %623
    %625 = vrot.lane.b32.xlu0 %v577, 96
    %v626 = vpop.permute.xlu0 %625
    %v627 = vsel %vm280, %v624, 0
    %v629 = vsel %vm280, %v626, 0
    %631 = vmatpush.msra.mxu0 0.0
    %632 = vmatpush.msra.mxu0 0.0
    %633 = vmatpush.msra.mxu0 0.0
    %634 = vmatpush.msra.mxu0 0.0
    %635 = vmatpush.msra.mxu0 0.0
    %636 = vmatpush.msra.mxu0 0.0
    %637 = vmatpush.msra.mxu0 0.0
    %638 = vmatpush.msra.mxu0 0.0
    %639 = vmatpush.msra.mxu0 0.0
    %640 = vmatpush.msra.mxu0 0.0
    %641 = vmatpush.msra.mxu0 0.0
    %642 = vmatpush.msra.mxu0 0.0
    %643 = vmatpush.msra.mxu0 %v618
    %644 = vmatpush.msra.mxu0 %v617
    %645 = vmatpush.msra.mxu0 %v616
    %646 = vmatpush.msra.mxu0 %v615
    %647 = vmatmul.f32.gmra.mxu0 %v627
    %v648 = vpop.f32.mrf.mxu0
    %v649 = vadd.f32 %v621, %v648
    %650 = vmatmul.f32.gmra.mxu0 %v629
    %v651 = vpop.f32.mrf.mxu0
    %v652 = vadd.f32 %v621, %v651
    %653 = vdwg.mxu0
    %654 = vset.pattern.permute.xlu0 16
    %655 = vperm.xlu0 %654, %v149
    %v656 = vpop.permute.xlu0 %655
    %658 = vset.pattern.permute.xlu0 16
    %659 = vperm.xlu0 %658, %v150
    %v660 = vpop.permute.xlu0 %659
    %v662 = vmul.f32 %v656, %v649
    %v663 = vmul.f32 %v660, %v652
    %v664 = vsub.f32 1.0, %v149
    %v665 = vsub.f32 1.0, %v150
    %667 = vset.pattern.permute.xlu0 16
    %668 = vperm.xlu0 %667, %v664
    %v669 = vpop.permute.xlu0 %668
    %672 = vset.pattern.permute.xlu0 16
    %673 = vperm.xlu0 %672, %v665
    %v674 = vpop.permute.xlu0 %673
    %v676 = vmul.f32 %v669, %v610
    %v677 = vmul.f32 %v674, %v613
    %v678 = vadd.f32 %v662, %v676
    %v679 = vadd.f32 %v663, %v677
    %vm680 = vcmask 130048
    %681 = vst.msk [vmem:[#allocation12] sm:$0xff] %vm680, %v495
    %682 = vst.msk [vmem:[#allocation12 + $0x8] sm:$0xff] %vm680, %v498
    %vm683 = vcmask 31744
    %684 = vst.msk [vmem:[%s22] sm:$0xff] %vm683, %v678
    %685 = vst.msk [vmem:[%s22 + $0x8] sm:$0xff] %vm683, %v679
    %v686 = vsub.f32 %v495, %v149
    %v687 = vsub.f32 %v498, %v150
    %v688 = vmul.f32 %v686, %v686
    %v689 = vmul.f32 %v687, %v687
    %v690 = vsel %vm680, %v688, 0.0
    %v691 = vsel %vm680, %v689, 0.0
    %v692 = vadd.f32 %v690, %v691
    %693 = vadd.xlane.f32.xlu0 %v692
    %v694 = vpop.xlane.xlu0 %693
    %v695 = vrot.slane %v694, 4
    %v696 = vadd.f32 %v694, %v695
    %v697 = vrot.slane %v696, 2
    %v698 = vadd.f32 %v696, %v697
    %v699 = vrot.slane %v698, 1
    %v700 = vadd.f32 %v698, %v699
    %s701 = vtos %v700
    %v702 = vadd.f32 %v350, 1.0
    %v703 = vadd.f32 %v353, 1.0
    %v704 = vmul.f32 %v350, %v350
    %v705 = vmul.f32 %v353, %v353
    %708 = vrot.lane.b32.xlu0 %v704, 32
    %v709 = vpop.permute.xlu0 %708
    %710 = vrot.lane.b32.xlu0 %v705, 32
    %v711 = vpop.permute.xlu0 %710
    %v714 = vsub.f32 %v702, %v709
    %v715 = vsub.f32 %v703, %v711
    %v716 = vmul.f32 %v358, %v358
    %v717 = vmul.f32 %v360, %v360
    %v718 = vsub.f32 %v714, %v716
    %v719 = vsub.f32 %v715, %v717
    %v720 = vmul.f32 %v718, -0.5
    %v721 = vmul.f32 %v719, -0.5
    %724 = vrot.lane.b32.xlu0 %v720, 96
    %v725 = vpop.permute.xlu0 %724
    %726 = vrot.lane.b32.xlu0 %v721, 96
    %v727 = vpop.permute.xlu0 %726
    %v730 = vsel %vm280, %v725, 0.0
    %v731 = vsel %vm280, %v727, 0.0
    %v732 = vadd.f32 %v730, %v731
    %733 = vadd.xlane.f32.xlu0 %v732
    %v734 = vpop.xlane.xlu0 %733
    %v735 = vrot.slane %v734, 4
    %v736 = vadd.f32 %v734, %v735
    %v737 = vrot.slane %v736, 2
    %v738 = vadd.f32 %v736, %v737
    %v739 = vrot.slane %v738, 1
    %v740 = vadd.f32 %v738, %v739
    %s741 = vtos %v740
    %v742 = vlog2.pop %v149
    %v743 = vmul.f32 %v742, 0.6931472
    %v744 = vlog2.pop %v150
    %v745 = vmul.f32 %v744, 0.6931472
    %v746 = vmax.f32 %v743, -100.0
    %v747 = vmax.f32 %v745, -100.0
    %v748 = vlog2.pop %v664
    %v749 = vmul.f32 %v748, 0.6931472
    %v750 = vlog2.pop %v665
    %v751 = vmul.f32 %v750, 0.6931472
    %v752 = vmax.f32 %v749, -100.0
    %v753 = vmax.f32 %v751, -100.0
    %v754 = vmul.f32 %v149, %v746
    %v755 = vmul.f32 %v150, %v747
    %v756 = vmul.f32 %v664, %v752
    %v757 = vmul.f32 %v665, %v753
    %v758 = vadd.f32 %v754, %v756
    %v759 = vadd.f32 %v755, %v757
    %v760 = vsub.f32 0.0, %v758
    %v761 = vsub.f32 0.0, %v759
    %764 = vrot.lane.b32.xlu0 %v760, 112
    %v765 = vpop.permute.xlu0 %764
    %766 = vrot.lane.b32.xlu0 %v761, 112
    %v767 = vpop.permute.xlu0 %766
    %vm770 = vcmask 7168
    %v771 = vsel %vm770, %v765, 0.0
    %v772 = vsel %vm770, %v767, 0.0
    %v773 = vadd.f32 %v771, %v772
    %774 = vadd.xlane.f32.xlu0 %v773
    %v775 = vpop.xlane.xlu0 %774
    %v776 = vrot.slane %v775, 4
    %v777 = vadd.f32 %v775, %v776
    %v778 = vrot.slane %v777, 2
    %v779 = vadd.f32 %v777, %v778
    %v780 = vrot.slane %v779, 1
    %v781 = vadd.f32 %v779, %v780
    %s782 = vtos %v781
    %783 = vrot.lane.b32.xlu0 %v149, 111
    %v784 = vpop.permute.xlu0 %783
    %785 = vrot.lane.b32.xlu0 %v150, 111
    %v786 = vpop.permute.xlu0 %785
    %v789 = vsub.f32 %v678, %v784
    %v790 = vsub.f32 %v679, %v786
    %v791 = vmul.f32 %v789, %v789
    %v792 = vmul.f32 %v790, %v790
    %v793 = vsel %vm683, %v791, 0.0
    %v794 = vsel %vm683, %v792, 0.0
    %v795 = vadd.f32 %v793, %v794
    %796 = vadd.xlane.f32.xlu0 %v795
    %v797 = vpop.xlane.xlu0 %796
    %v798 = vrot.slane %v797, 4
    %v799 = vadd.f32 %v797, %v798
    %v800 = vrot.slane %v799, 2
    %v801 = vadd.f32 %v799, %v800
    %v802 = vrot.slane %v801, 1
    %v803 = vadd.f32 %v801, %v802
    %s804 = vtos %v803
    %v805 = vlaneseq
    %v806 = vshrl.u32 %v805, 7
    %vm807 = vcmp.eq.s32.totalorder %v806, 0
    %vm808 = vcmp.eq.s32.totalorder %v501, 0
    %vm809 = vmand %vm807, %vm808
    %v810 = vstv %s701
    %v811 = vsel %vm809, %v810, 0.0
    %vm812 = vcmp.eq.s32.totalorder %v501, 1
    %vm813 = vmand %vm807, %vm812
    %v814 = vstv %s741
    %v815 = vsel %vm813, %v814, 0.0
    %v816 = vadd.f32 %v811, %v815
    %vm817 = vcmp.eq.s32.totalorder %v501, 2
    %vm818 = vmand %vm807, %vm817
    %v819 = vstv %s782
    %v820 = vsel %vm818, %v819, 0.0
    %v821 = vadd.f32 %v816, %v820
    %vm822 = vcmp.eq.s32.totalorder %v501, 3
    %vm823 = vmand %vm807, %vm822
    %v824 = vstv %s804
    %v825 = vsel %vm823, %v824, 0.0
    %v826 = vadd.f32 %v821, %v825
    %827 = vst [vmem:[#allocation13] sm:$0xff] %v826
    // Predicated region
    $region106: #{tpu_custom_call.1} parent=1 // pred_check
      _
    $region107: #{tpu_custom_call.1} parent=1 // pred_check_branch
      %829 = sbr.rel (0) target = $region109
    $region108: #{tpu_custom_call.1} parent=1 // pred_region
      %831 = vsyncadd [#allocation4], 0
      %s832 = sshll.u32 [#allocation12], 4
      %s833 = int_to_ptr.vmem [resolvable:$true] %s832
      %s834 = sshll.u32 %s21, 4
      %s835 = int_to_ptr.hbm [resolvable:$true] %s834
      %840 = dma.vmem_to_hbm [thread:$0]  %s833, 256, %s835, [#allocation4], 128, 128, 8
    $region109: #{tpu_custom_call.1} parent=1 // pred_fallthru
      _
    // Predicated region
    $region110: #{tpu_custom_call.1} parent=1 // pred_check
      _
    $region111: #{tpu_custom_call.1} parent=1 // pred_check_branch
      %842 = sbr.rel (0) target = $region113
    $region112: #{tpu_custom_call.1} parent=1 // pred_region
      _
    $region113: #{tpu_custom_call.1} parent=1 // pred_fallthru
      _
    // Predicated region
    $region114: #{tpu_custom_call.1} parent=1 // pred_check
      _
    $region115: #{tpu_custom_call.1} parent=1 // pred_check_branch
      %844 = sbr.rel (0) target = $region117
    $region116: #{tpu_custom_call.1} parent=1 // pred_region
      %846 = vsyncadd [#allocation14], 0
      %s848 = sshll.u32 [#allocation13], 4
      %s849 = int_to_ptr.vmem [resolvable:$true] %s848
      %s850 = sshll.u32 %s23, 4
      %s851 = int_to_ptr.hbm [resolvable:$true] %s850
      %853 = dma.vmem_to_hbm [thread:$0]  %s849, 128, %s851, [#allocation14]
    $region117: #{tpu_custom_call.1} parent=1 // pred_fallthru
      _
    // Predicated region
    $region118: #{tpu_custom_call.1} parent=1 // pred_check
      _
    $region119: #{tpu_custom_call.1} parent=1 // pred_check_branch
      %855 = sbr.rel (0) target = $region121
    $region120: #{tpu_custom_call.1} parent=1 // pred_region
      %857 = dma.done [#allocation4], 256
    $region121: #{tpu_custom_call.1} parent=1 // pred_fallthru
      _
    // Predicated region
    $region122: #{tpu_custom_call.1} parent=1 // pred_check
      _
    $region123: #{tpu_custom_call.1} parent=1 // pred_check_branch
      %859 = sbr.rel (0) target = $region125
    $region124: #{tpu_custom_call.1} parent=1 // pred_region
      _
    $region125: #{tpu_custom_call.1} parent=1 // pred_fallthru
      _
    // Predicated region
    $region126: #{tpu_custom_call.1} parent=1 // pred_check
      _
    $region127: #{tpu_custom_call.1} parent=1 // pred_check_branch
      %861 = sbr.rel (0) target = $region129
    $region128: #{tpu_custom_call.1} parent=1 // pred_region
      %863 = dma.done [#allocation14], 128
    $region129: #{tpu_custom_call.1} parent=1 // pred_fallthru
      _
    %864 = vsyncpa [#allocation3], 1
    %865 = vsyncpa [#allocation7], 1
    %866 = vsyncpa [#allocation10], 1
    %867 = vsyncpa [#allocation4], 1
    %868 = vsyncpa [#allocation14], 1
    %869 = vsyncpa [#allocation5], 1

</llo_original>
